<compile_context>
chip_gen: v6e
topology: v6e:2x2x1
jax: 0.10.0
libtpu: 0.0.40
codegen_flags: <defaults>
</compile_context>

<pallas_src>
import jax
import jax.numpy as jnp
from jax import lax
from jax.experimental import pallas as pl
from jax.experimental.pallas import tpu as pltpu

LANE = 128     # TPU lane width  (last-dim tile)
SUBLANE = 8    # TPU sublane width (second-to-last-dim tile)


def _round_up(x, m):
    return (x + m - 1) // m * m


def _pad_gate_cols(w, H, Hp):
    """Zero-pad each of the 3 (r, z, n) gate blocks along the last dim H -> Hp."""
    pads = [(0, 0)] * (w.ndim - 1) + [(0, Hp - H)]
    return jnp.concatenate(
        [jnp.pad(w[..., g * H:(g + 1) * H], pads) for g in range(3)], axis=-1)


# ---------------------------------------------------------------------------
# Fused kernel: all GRU layers + fc_out, one time chunk per grid step.
# ---------------------------------------------------------------------------
def make_fused_gru_kernel(n_layers, Tc, Bp, Hp):
    """Ref layout (time-major, batch padded to Bp sublanes):

      refs[0]                    x chunk:  (Tc*Bp, Ep)    bf16   (BlockSpec tiled)
      refs[1+4l .. 4+4l]         layer l:  w_ih (Ip, 3Hp) bf16, w_hh (Hp, 3Hp) bf16,
                                           b_comb (1, 3Hp) f32,  b_hhn (1, Hp) f32
      refs[1 + 4*n_layers]       fc_w:     (Hp, Op) bf16
      refs[2 + 4*n_layers]       fc_b:     (1, Op)  f32
      refs[3 + 4*n_layers]       out chunk:(Tc*Bp, Op) f32       (BlockSpec tiled)
      refs[4 + 4*n_layers]       gi scratch: (Tc*Bp, 3Hp) f32    (per chunk)
      refs[5 + 4*n_layers]       y  scratch: (Tc*Bp, Hp)  f32    (per chunk)
      refs[6 + 4*n_layers]       h  scratch: (n_layers, Bp, Hp) f32 (persists
                                             across grid steps = chunk carry)
    """

    def kernel(*refs):
        x_ref = refs[0]
        layer_refs = [refs[1 + 4 * l: 5 + 4 * l] for l in range(n_layers)]
        fc_w_ref = refs[1 + 4 * n_layers]
        fc_b_ref = refs[2 + 4 * n_layers]
        out_ref = refs[3 + 4 * n_layers]
        gi_ref = refs[4 + 4 * n_layers]
        y_ref = refs[5 + 4 * n_layers]
        h_ref = refs[6 + 4 * n_layers]

        # Hidden-state carry init on the first time chunk only.
        @pl.when(pl.program_id(0) == 0)
        def _():
            h_ref[...] = jnp.zeros_like(h_ref)

        for l, (w_ih_ref, w_hh_ref, b_comb_ref, b_hhn_ref) in enumerate(layer_refs):
            # Hoisted input GEMM for this chunk (no recurrence dependence):
            #   gi = X_c @ W_ih + (b_ih + [b_hh_r, b_hh_z, 0])
            # bf16 matmul inputs, f32 accumulation.
            inp = x_ref[...] if l == 0 else y_ref[...].astype(jnp.bfloat16)
            gi_ref[...] = (
                jnp.dot(inp, w_ih_ref[...],
                        preferred_element_type=jnp.float32)
                + b_comb_ref[...]
            )

            # Hoist invariants out of the serial loop (broadcasts are not CSE'd).
            w_hh = w_hh_ref[...]
            b_hhn = jnp.broadcast_to(b_hhn_ref[...], (Bp, Hp))

            def step(t, h):
                row = pl.multiple_of(t * Bp, SUBLANE)          # sublane-aligned
                gi = gi_ref[pl.ds(row, Bp), :]                  # (Bp, 3Hp)
                gh = jnp.dot(h.astype(jnp.bfloat16), w_hh,
                             preferred_element_type=jnp.float32)  # (Bp, 3Hp)
                r = jax.nn.sigmoid(gi[:, 0:Hp] + gh[:, 0:Hp])
                z = jax.nn.sigmoid(gi[:, Hp:2 * Hp] + gh[:, Hp:2 * Hp])
                n = jnp.tanh(gi[:, 2 * Hp:3 * Hp]
                             + r * (gh[:, 2 * Hp:3 * Hp] + b_hhn))
                h = (1.0 - z) * n + z * h
                y_ref[pl.ds(row, Bp), :] = h                    # dense 128-lane store
                return h

            # Serial recurrence over the chunk; h stays in vregs between steps
            # and is written back to the persistent carry once per chunk.
            h_ref[l] = lax.fori_loop(0, Tc, step, h_ref[l], unroll=True)

        # fc_out fused per chunk: lane-dense GEMM + store; the writeback DMA
        # overlaps the next chunk's compute via the output BlockSpec pipeline.
        out_ref[...] = (
            jnp.dot(y_ref[...].astype(jnp.bfloat16), fc_w_ref[...],
                    preferred_element_type=jnp.float32)
            + fc_b_ref[...]
        )

    return kernel


# ---------------------------------------------------------------------------
# Wrapper
# ---------------------------------------------------------------------------
def gru_model_forward(src, p, hidden_dim, output_dim, t_chunk=16):
    """src: (B, T) int32 token ids -> (B, T, output_dim) float32."""
    B, T = src.shape
    n_layers = len(p["layers"])
    Ep = p["embedding"].shape[1]
    Hp = p["layers"][0]["w_hh"].shape[0]
    Op = p["fc_w"].shape[1]
    Bp = _round_up(B, SUBLANE)
    Tc = min(t_chunk, T)                 # timesteps per chunk
    Tp = _round_up(T, Tc)                # pad T to a whole number of chunks
    n_chunks = Tp // Tc

    # Embedding gather (bf16 table) directly in time-major order; batch padded
    # to a full sublane group, time padded to whole chunks (garbage timesteps
    # run after all real ones and are stripped).  Dropout = identity (eval).
    src_tm = jnp.pad(jnp.transpose(src), ((0, Tp - T), (0, Bp - B)))   # (Tp, Bp)
    x = jnp.take(p["embedding"], src_tm, axis=0).reshape(Tp * Bp, Ep)  # bf16

    flat_weights = []
    weight_specs = []
    for lyr in p["layers"]:
        for name in ("w_ih", "w_hh", "b_comb", "b_hhn"):
            flat_weights.append(lyr[name])
            # Small, reused every chunk -> whole-array resident in VMEM.
            weight_specs.append(pl.BlockSpec(memory_space=pltpu.MemorySpace.VMEM))
    flat_weights += [p["fc_w"], p["fc_b"]]
    weight_specs += [pl.BlockSpec(memory_space=pltpu.MemorySpace.VMEM)] * 2

    out = pl.pallas_call(
        make_fused_gru_kernel(n_layers, Tc, Bp, Hp),
        out_shape=jax.ShapeDtypeStruct((Tp * Bp, Op), jnp.float32),
        grid=(n_chunks,),
        in_specs=[pl.BlockSpec((Tc * Bp, Ep), lambda c: (c, 0))] + weight_specs,
        out_specs=pl.BlockSpec((Tc * Bp, Op), lambda c: (c, 0)),
        scratch_shapes=[
            pltpu.VMEM((Tc * Bp, 3 * Hp), jnp.float32),    # gi (per chunk)
            pltpu.VMEM((Tc * Bp, Hp), jnp.float32),        # y  (per chunk)
            pltpu.VMEM((n_layers, Bp, Hp), jnp.float32),   # h carry across chunks
        ],
        compiler_params=pltpu.CompilerParams(
            # Time chunks carry state -> must stay sequential.
            dimension_semantics=("arbitrary",),
            # Explicit scoped-VMEM budget; chunk working set must fit well
            # under this (v7x has only 64 MiB physical VMEM).
            vmem_limit_bytes=32 * 1024 * 1024),
    )(x, *flat_weights)

    out = out.reshape(Tp, Bp, Op)[:T, :B, :output_dim]   # strip time/batch/lane pad
    return jnp.transpose(out, (1, 0, 2))                  # (B, T, O) batch-first


# ---------------------------------------------------------------------------
# Parameters: raw (PyTorch-shaped) init + padded/folded kernel layout.
# ---------------------------------------------------------------------------
def init_raw_params(key, input_dim, emb_dim, hidden_dim, output_dim, n_layers):
    keys = jax.random.split(key, 2 + 4 * n_layers + 2)
    ki = iter(keys)
    raw = {}
    # nn.Embedding: N(0, 1)
    raw["embedding"] = jax.random.normal(next(ki), (input_dim, emb_dim),
                                         dtype=jnp.float32)
    # nn.GRU: U(-1/sqrt(H), 1/sqrt(H)); gate order (r, z, n)
    k = 1.0 / jnp.sqrt(hidden_dim)
    layers = []
    for l in range(n_layers):
        in_sz = emb_dim if l == 0 else hidden_dim
        w_ih = jax.random.uniform(next(ki), (3 * hidden_dim, in_sz),
                                  minval=-k, maxval=k, dtype=jnp.float32)
        w_hh = jax.random.uniform(next(ki), (3 * hidden_dim, hidden_dim),
                                  minval=-k, maxval=k, dtype=jnp.float32)
        b_ih = jax.random.uniform(next(ki), (3 * hidden_dim,),
                                  minval=-k, maxval=k, dtype=jnp.float32)
        b_hh = jax.random.uniform(next(ki), (3 * hidden_dim,),
                                  minval=-k, maxval=k, dtype=jnp.float32)
        layers.append((w_ih, w_hh, b_ih, b_hh))
    raw["layers"] = layers
    # nn.Linear(hidden_dim, output_dim)
    raw["fc_w"] = jax.random.uniform(next(ki), (output_dim, hidden_dim),
                                     minval=-k, maxval=k, dtype=jnp.float32)
    raw["fc_b"] = jax.random.uniform(next(ki), (output_dim,),
                                     minval=-k, maxval=k, dtype=jnp.float32)
    return raw


def prepare_params(raw, emb_dim, hidden_dim, output_dim):
    """Transpose, fold biases, zero-pad to lane/sublane-aligned shapes, and
    store matmul operands (embedding, w_ih, w_hh, fc_w) in bf16; biases f32."""
    H = hidden_dim
    Ep = _round_up(emb_dim, LANE)
    Hp = _round_up(hidden_dim, LANE)
    Op = _round_up(output_dim, LANE)

    p = {"embedding": jnp.pad(raw["embedding"],
                              ((0, 0), (0, Ep - emb_dim))).astype(jnp.bfloat16)}

    layers = []
    for l, (w_ih, w_hh, b_ih, b_hh) in enumerate(raw["layers"]):
        in_dim = w_ih.shape[1]
        Ip = Ep if l == 0 else Hp
        w_ih_p = _pad_gate_cols(jnp.pad(w_ih.T, ((0, Ip - in_dim), (0, 0))),
                                H, Hp).astype(jnp.bfloat16)
        w_hh_p = _pad_gate_cols(jnp.pad(w_hh.T, ((0, Hp - H), (0, 0))),
                                H, Hp).astype(jnp.bfloat16)
        # Fold b_ih + (r, z) halves of b_hh into the hoisted GEMM bias.
        b_comb = b_ih + jnp.concatenate([b_hh[:2 * H],
                                         jnp.zeros((H,), jnp.float32)])
        b_comb_p = _pad_gate_cols(b_comb[None, :], H, Hp)            # (1, 3Hp) f32
        b_hhn_p = jnp.pad(b_hh[2 * H:], (0, Hp - H))[None, :]        # (1, Hp)  f32
        layers.append({"w_ih": w_ih_p, "w_hh": w_hh_p,
                       "b_comb": b_comb_p, "b_hhn": b_hhn_p})
    p["layers"] = layers

    p["fc_w"] = jnp.pad(raw["fc_w"].T,
                        ((0, Hp - H), (0, Op - output_dim))).astype(jnp.bfloat16)
    p["fc_b"] = jnp.pad(raw["fc_b"], (0, Op - output_dim))[None, :]
    return p


# ---------------------------------------------------------------------------
# Pure-JAX reference (mirrors torch.nn.GRU(batch_first=True) + fc_out).
# ---------------------------------------------------------------------------
def _bf16_round(w):
    return w.astype(jnp.bfloat16).astype(jnp.float32)


def quantize_raw(raw):
    """Round matmul operands through bf16 (matching kernel storage), keep f32."""
    return {
        "embedding": _bf16_round(raw["embedding"]),
        "layers": [(_bf16_round(w_ih), _bf16_round(w_hh), b_ih, b_hh)
                   for (w_ih, w_hh, b_ih, b_hh) in raw["layers"]],
        "fc_w": _bf16_round(raw["fc_w"]),
        "fc_b": raw["fc_b"],
    }


def reference_forward(src, raw):
    x = jnp.take(raw["embedding"], src, axis=0)               # (B, T, E)
    B = x.shape[0]
    for (w_ih, w_hh, b_ih, b_hh) in raw["layers"]:
        H = w_hh.shape[1]

        def step(h, x_t):
            gi = x_t @ w_ih.T + b_ih
            gh = h @ w_hh.T + b_hh
            r = jax.nn.sigmoid(gi[:, :H] + gh[:, :H])
            z = jax.nn.sigmoid(gi[:, H:2 * H] + gh[:, H:2 * H])
            n = jnp.tanh(gi[:, 2 * H:] + r * gh[:, 2 * H:])
            h_new = (1.0 - z) * n + z * h
            return h_new, h_new

        h0 = jnp.zeros((B, H), jnp.float32)
        _, ys = lax.scan(step, h0, jnp.transpose(x, (1, 0, 2)))
        x = jnp.transpose(ys, (1, 0, 2))
    return x @ raw["fc_w"].T + raw["fc_b"]


# ---------------------------------------------------------------------------
if __name__ == "__main__":
    input_dim = 50     # vocab size
    emb_dim = 32
    hidden_dim = 32
    output_dim = 16
    n_layers = 2
    batch, seq = 2, 8

    key = jax.random.PRNGKey(0)
    k_param, k_src = jax.random.split(key)
    raw = init_raw_params(k_param, input_dim, emb_dim, hidden_dim,
                          output_dim, n_layers)
    src = jax.random.randint(k_src, (batch, seq), 0, input_dim, dtype=jnp.int32)

    prepared = prepare_params(raw, emb_dim, hidden_dim, output_dim)

    # t_chunk=4 with T=8 -> 2 grid steps, exercising the chunked carry path.
    fwd = jax.jit(lambda s, pp: gru_model_forward(s, pp, hidden_dim,
                                                  output_dim, t_chunk=4))
    preds = fwd(src, prepared)
    jax.block_until_ready(preds)

    assert preds.shape == (batch, seq, output_dim)
    assert preds.dtype == jnp.float32

    # Sanity check vs. pure-JAX reference using bf16-rounded matmul weights
    # (what the kernel actually stores); f32 math in the reference.
    with jax.default_matmul_precision("float32"):
        ref = reference_forward(src, quantize_raw(raw))
    max_err = float(jnp.max(jnp.abs(preds - ref)))
    if max_err > 3e-2:
        raise AssertionError(f"kernel/reference mismatch: max abs err {max_err}")

    print("KERNEL_OK")
</pallas_src>

<mosaic_0001>
module attributes {stable_mosaic.version = 11 : i64} {
  func.func @kernel(%arg0: i32, %arg1: memref<32x128xbf16, #tpu.memory_space<vmem>>, %arg2: memref<128x384xbf16, #tpu.memory_space<vmem>>, %arg3: memref<128x384xbf16, #tpu.memory_space<vmem>>, %arg4: memref<1x384xf32, #tpu.memory_space<vmem>>, %arg5: memref<1x128xf32, #tpu.memory_space<vmem>>, %arg6: memref<128x384xbf16, #tpu.memory_space<vmem>>, %arg7: memref<128x384xbf16, #tpu.memory_space<vmem>>, %arg8: memref<1x384xf32, #tpu.memory_space<vmem>>, %arg9: memref<1x128xf32, #tpu.memory_space<vmem>>, %arg10: memref<128x128xbf16, #tpu.memory_space<vmem>>, %arg11: memref<1x128xf32, #tpu.memory_space<vmem>>, %arg12: memref<32x128xf32, #tpu.memory_space<vmem>>, %arg13: memref<32x384xf32, #tpu.memory_space<vmem>>, %arg14: memref<32x128xf32, #tpu.memory_space<vmem>>, %arg15: memref<2x8x128xf32, #tpu.memory_space<vmem>>) attributes {dimension_semantics = [#tpu.dimension_semantics<arbitrary>], iteration_bounds = array<i64: 2>, scalar_prefetch = 0 : i64, scratch_operands = 3 : i64, tpu.core_type = #tpu.core_type<tc>, window_params = [{transform_indices = @transform_0, window_bounds = array<i64: 32, 128>}, {pipeline_mode = #tpu.pipeline_mode<synchronous>, transform_indices = @transform_1, window_bounds = array<i64: 128, 384>}, {pipeline_mode = #tpu.pipeline_mode<synchronous>, transform_indices = @transform_2, window_bounds = array<i64: 128, 384>}, {pipeline_mode = #tpu.pipeline_mode<synchronous>, transform_indices = @transform_3, window_bounds = array<i64: 1, 384>}, {pipeline_mode = #tpu.pipeline_mode<synchronous>, transform_indices = @transform_4, window_bounds = array<i64: 1, 128>}, {pipeline_mode = #tpu.pipeline_mode<synchronous>, transform_indices = @transform_5, window_bounds = array<i64: 128, 384>}, {pipeline_mode = #tpu.pipeline_mode<synchronous>, transform_indices = @transform_6, window_bounds = array<i64: 128, 384>}, {pipeline_mode = #tpu.pipeline_mode<synchronous>, transform_indices = @transform_7, window_bounds = array<i64: 1, 384>}, {pipeline_mode = #tpu.pipeline_mode<synchronous>, transform_indices = @transform_8, window_bounds = array<i64: 1, 128>}, {pipeline_mode = #tpu.pipeline_mode<synchronous>, transform_indices = @transform_9, window_bounds = array<i64: 128, 128>}, {pipeline_mode = #tpu.pipeline_mode<synchronous>, transform_indices = @transform_10, window_bounds = array<i64: 1, 128>}, {transform_indices = @transform_11, window_bounds = array<i64: 32, 128>}]} {
    %c0_i32 = arith.constant 0 : i32
    %0 = arith.cmpi eq, %arg0, %c0_i32 : i32
    %1 = arith.extui %0 : i1 to i32
    %c0_i32_0 = arith.constant 0 : i32
    %2 = arith.cmpi ne, %1, %c0_i32_0 : i32
    scf.if %2 {
      %cst_106 = arith.constant 0.000000e+00 : f32
      %324 = vector.broadcast %cst_106 : f32 to vector<2x8x128xf32>
      %c0_107 = arith.constant 0 : index
      %c0_108 = arith.constant 0 : index
      %c0_109 = arith.constant 0 : index
      %325 = vector.load %arg15[%c0_107, %c0_108, %c0_109] : memref<2x8x128xf32, #tpu.memory_space<vmem>>, vector<2x8x128xf32>
      tpu.vector_store %arg15[%c0_107, %c0_108, %c0_109], %324 {strides = array<i32>} : memref<2x8x128xf32, #tpu.memory_space<vmem>>, vector<2x8x128xf32>,
    } else {
    }
    %c0 = arith.constant 0 : index
    %c0_1 = arith.constant 0 : index
    %3 = vector.load %arg1[%c0, %c0_1] : memref<32x128xbf16, #tpu.memory_space<vmem>>, vector<32x128xbf16>
    %c0_2 = arith.constant 0 : index
    %c0_3 = arith.constant 0 : index
    %4 = vector.load %arg2[%c0_2, %c0_3] : memref<128x384xbf16, #tpu.memory_space<vmem>>, vector<128x384xbf16>
    %cst = arith.constant dense<0.000000e+00> : vector<32x384xf32>
    %5 = tpu.matmul %3, %4, %cst {dimension_numbers = #tpu.dot_dimension_numbers<[1], [0], [0], [1], [0, 0, 1, 1], [], []>} : vector<32x128xbf16>, vector<128x384xbf16>, vector<32x384xf32> -> vector<32x384xf32>
    %c0_4 = arith.constant 0 : index
    %c0_5 = arith.constant 0 : index
    %6 = vector.load %arg4[%c0_4, %c0_5] : memref<1x384xf32, #tpu.memory_space<vmem>>, vector<1x384xf32>
    %7 = vector.broadcast %6 : vector<1x384xf32> to vector<32x384xf32>
    %8 = arith.addf %5, %7 : vector<32x384xf32>
    %c0_6 = arith.constant 0 : index
    %c0_7 = arith.constant 0 : index
    %9 = vector.load %arg13[%c0_6, %c0_7] : memref<32x384xf32, #tpu.memory_space<vmem>>, vector<32x384xf32>
    tpu.vector_store %arg13[%c0_6, %c0_7], %8 {strides = array<i32>} : memref<32x384xf32, #tpu.memory_space<vmem>>, vector<32x384xf32>,
    %c0_8 = arith.constant 0 : index
    %c0_9 = arith.constant 0 : index
    %10 = vector.load %arg3[%c0_8, %c0_9] : memref<128x384xbf16, #tpu.memory_space<vmem>>, vector<128x384xbf16>
    %c0_10 = arith.constant 0 : index
    %c0_11 = arith.constant 0 : index
    %11 = vector.load %arg5[%c0_10, %c0_11] : memref<1x128xf32, #tpu.memory_space<vmem>>, vector<1x128xf32>
    %12 = vector.shape_cast %11 : vector<1x128xf32> to vector<1x128xf32>
    %13 = vector.broadcast %12 : vector<1x128xf32> to vector<8x128xf32>
    %c0_12 = arith.constant 0 : index
    %c0_13 = arith.constant 0 : index
    %c0_14 = arith.constant 0 : index
    %14 = vector.load %arg15[%c0_12, %c0_13, %c0_14] : memref<2x8x128xf32, #tpu.memory_space<vmem>>, vector<1x8x128xf32>
    %15 = vector.shape_cast %14 : vector<1x8x128xf32> to vector<8x128xf32>
    %c0_i32_15 = arith.constant 0 : i32
    %c8_i32 = arith.constant 8 : i32
    %16 = arith.muli %c0_i32_15, %c8_i32 : i32
    %17 = tpu.assume_multiple %16, 8 : i32
    %18 = arith.index_cast %17 : i32 to index
    %c0_16 = arith.constant 0 : index
    %19 = vector.load %arg13[%18, %c0_16] : memref<32x384xf32, #tpu.memory_space<vmem>>, vector<8x384xf32>
    %20 = arith.truncf %15 : vector<8x128xf32> to vector<8x128xbf16>
    %cst_17 = arith.constant dense<0.000000e+00> : vector<8x384xf32>
    %21 = tpu.matmul %20, %10, %cst_17 {dimension_numbers = #tpu.dot_dimension_numbers<[1], [0], [0], [1], [0, 0, 1, 1], [], []>} : vector<8x128xbf16>, vector<128x384xbf16>, vector<8x384xf32> -> vector<8x384xf32>
    %22 = vector.extract_strided_slice %19 {offsets = [0, 0], sizes = [8, 128], strides = [1, 1]} : vector<8x384xf32> to vector<8x128xf32>
    %23 = vector.extract_strided_slice %21 {offsets = [0, 0], sizes = [8, 128], strides = [1, 1]} : vector<8x384xf32> to vector<8x128xf32>
    %24 = arith.addf %22, %23 : vector<8x128xf32>
    %25 = arith.negf %24 : vector<8x128xf32>
    %26 = math.exp %25 : vector<8x128xf32>
    %cst_18 = arith.constant 1.000000e+00 : f32
    %27 = vector.broadcast %cst_18 : f32 to vector<8x128xf32>
    %28 = arith.addf %27, %26 : vector<8x128xf32>
    %29 = arith.divf %27, %28 : vector<8x128xf32>
    %30 = vector.extract_strided_slice %19 {offsets = [0, 128], sizes = [8, 128], strides = [1, 1]} : vector<8x384xf32> to vector<8x128xf32>
    %31 = vector.extract_strided_slice %21 {offsets = [0, 128], sizes = [8, 128], strides = [1, 1]} : vector<8x384xf32> to vector<8x128xf32>
    %32 = arith.addf %30, %31 : vector<8x128xf32>
    %33 = arith.negf %32 : vector<8x128xf32>
    %34 = math.exp %33 : vector<8x128xf32>
    %cst_19 = arith.constant 1.000000e+00 : f32
    %35 = vector.broadcast %cst_19 : f32 to vector<8x128xf32>
    %36 = arith.addf %35, %34 : vector<8x128xf32>
    %37 = arith.divf %35, %36 : vector<8x128xf32>
    %38 = vector.extract_strided_slice %19 {offsets = [0, 256], sizes = [8, 128], strides = [1, 1]} : vector<8x384xf32> to vector<8x128xf32>
    %39 = vector.extract_strided_slice %21 {offsets = [0, 256], sizes = [8, 128], strides = [1, 1]} : vector<8x384xf32> to vector<8x128xf32>
    %40 = arith.addf %39, %13 : vector<8x128xf32>
    %41 = arith.mulf %29, %40 : vector<8x128xf32>
    %42 = arith.addf %38, %41 : vector<8x128xf32>
    %43 = math.tanh %42 : vector<8x128xf32>
    %cst_20 = arith.constant 1.000000e+00 : f32
    %44 = vector.broadcast %cst_20 : f32 to vector<8x128xf32>
    %45 = arith.subf %44, %37 : vector<8x128xf32>
    %46 = arith.mulf %45, %43 : vector<8x128xf32>
    %47 = arith.mulf %37, %15 : vector<8x128xf32>
    %48 = arith.addf %46, %47 : vector<8x128xf32>
    %49 = arith.index_cast %17 : i32 to index
    %c0_21 = arith.constant 0 : index
    %50 = vector.load %arg14[%49, %c0_21] : memref<32x128xf32, #tpu.memory_space<vmem>>, vector<8x128xf32>
    tpu.vector_store %arg14[%49, %c0_21], %48 {strides = array<i32>} : memref<32x128xf32, #tpu.memory_space<vmem>>, vector<8x128xf32>,
    %c1_i32 = arith.constant 1 : i32
    %c8_i32_22 = arith.constant 8 : i32
    %51 = arith.muli %c1_i32, %c8_i32_22 : i32
    %52 = tpu.assume_multiple %51, 8 : i32
    %53 = arith.index_cast %52 : i32 to index
    %c0_23 = arith.constant 0 : index
    %54 = vector.load %arg13[%53, %c0_23] : memref<32x384xf32, #tpu.memory_space<vmem>>, vector<8x384xf32>
    %55 = arith.truncf %48 : vector<8x128xf32> to vector<8x128xbf16>
    %cst_24 = arith.constant dense<0.000000e+00> : vector<8x384xf32>
    %56 = tpu.matmul %55, %10, %cst_24 {dimension_numbers = #tpu.dot_dimension_numbers<[1], [0], [0], [1], [0, 0, 1, 1], [], []>} : vector<8x128xbf16>, vector<128x384xbf16>, vector<8x384xf32> -> vector<8x384xf32>
    %57 = vector.extract_strided_slice %54 {offsets = [0, 0], sizes = [8, 128], strides = [1, 1]} : vector<8x384xf32> to vector<8x128xf32>
    %58 = vector.extract_strided_slice %56 {offsets = [0, 0], sizes = [8, 128], strides = [1, 1]} : vector<8x384xf32> to vector<8x128xf32>
    %59 = arith.addf %57, %58 : vector<8x128xf32>
    %60 = arith.negf %59 : vector<8x128xf32>
    %61 = math.exp %60 : vector<8x128xf32>
    %cst_25 = arith.constant 1.000000e+00 : f32
    %62 = vector.broadcast %cst_25 : f32 to vector<8x128xf32>
    %63 = arith.addf %62, %61 : vector<8x128xf32>
    %64 = arith.divf %62, %63 : vector<8x128xf32>
    %65 = vector.extract_strided_slice %54 {offsets = [0, 128], sizes = [8, 128], strides = [1, 1]} : vector<8x384xf32> to vector<8x128xf32>
    %66 = vector.extract_strided_slice %56 {offsets = [0, 128], sizes = [8, 128], strides = [1, 1]} : vector<8x384xf32> to vector<8x128xf32>
    %67 = arith.addf %65, %66 : vector<8x128xf32>
    %68 = arith.negf %67 : vector<8x128xf32>
    %69 = math.exp %68 : vector<8x128xf32>
    %cst_26 = arith.constant 1.000000e+00 : f32
    %70 = vector.broadcast %cst_26 : f32 to vector<8x128xf32>
    %71 = arith.addf %70, %69 : vector<8x128xf32>
    %72 = arith.divf %70, %71 : vector<8x128xf32>
    %73 = vector.extract_strided_slice %54 {offsets = [0, 256], sizes = [8, 128], strides = [1, 1]} : vector<8x384xf32> to vector<8x128xf32>
    %74 = vector.extract_strided_slice %56 {offsets = [0, 256], sizes = [8, 128], strides = [1, 1]} : vector<8x384xf32> to vector<8x128xf32>
    %75 = arith.addf %74, %13 : vector<8x128xf32>
    %76 = arith.mulf %64, %75 : vector<8x128xf32>
    %77 = arith.addf %73, %76 : vector<8x128xf32>
    %78 = math.tanh %77 : vector<8x128xf32>
    %cst_27 = arith.constant 1.000000e+00 : f32
    %79 = vector.broadcast %cst_27 : f32 to vector<8x128xf32>
    %80 = arith.subf %79, %72 : vector<8x128xf32>
    %81 = arith.mulf %80, %78 : vector<8x128xf32>
    %82 = arith.mulf %72, %48 : vector<8x128xf32>
    %83 = arith.addf %81, %82 : vector<8x128xf32>
    %84 = arith.index_cast %52 : i32 to index
    %c0_28 = arith.constant 0 : index
    %85 = vector.load %arg14[%84, %c0_28] : memref<32x128xf32, #tpu.memory_space<vmem>>, vector<8x128xf32>
    tpu.vector_store %arg14[%84, %c0_28], %83 {strides = array<i32>} : memref<32x128xf32, #tpu.memory_space<vmem>>, vector<8x128xf32>,
    %c2_i32 = arith.constant 2 : i32
    %c8_i32_29 = arith.constant 8 : i32
    %86 = arith.muli %c2_i32, %c8_i32_29 : i32
    %87 = tpu.assume_multiple %86, 8 : i32
    %88 = arith.index_cast %87 : i32 to index
    %c0_30 = arith.constant 0 : index
    %89 = vector.load %arg13[%88, %c0_30] : memref<32x384xf32, #tpu.memory_space<vmem>>, vector<8x384xf32>
    %90 = arith.truncf %83 : vector<8x128xf32> to vector<8x128xbf16>
    %cst_31 = arith.constant dense<0.000000e+00> : vector<8x384xf32>
    %91 = tpu.matmul %90, %10, %cst_31 {dimension_numbers = #tpu.dot_dimension_numbers<[1], [0], [0], [1], [0, 0, 1, 1], [], []>} : vector<8x128xbf16>, vector<128x384xbf16>, vector<8x384xf32> -> vector<8x384xf32>
    %92 = vector.extract_strided_slice %89 {offsets = [0, 0], sizes = [8, 128], strides = [1, 1]} : vector<8x384xf32> to vector<8x128xf32>
    %93 = vector.extract_strided_slice %91 {offsets = [0, 0], sizes = [8, 128], strides = [1, 1]} : vector<8x384xf32> to vector<8x128xf32>
    %94 = arith.addf %92, %93 : vector<8x128xf32>
    %95 = arith.negf %94 : vector<8x128xf32>
    %96 = math.exp %95 : vector<8x128xf32>
    %cst_32 = arith.constant 1.000000e+00 : f32
    %97 = vector.broadcast %cst_32 : f32 to vector<8x128xf32>
    %98 = arith.addf %97, %96 : vector<8x128xf32>
    %99 = arith.divf %97, %98 : vector<8x128xf32>
    %100 = vector.extract_strided_slice %89 {offsets = [0, 128], sizes = [8, 128], strides = [1, 1]} : vector<8x384xf32> to vector<8x128xf32>
    %101 = vector.extract_strided_slice %91 {offsets = [0, 128], sizes = [8, 128], strides = [1, 1]} : vector<8x384xf32> to vector<8x128xf32>
    %102 = arith.addf %100, %101 : vector<8x128xf32>
    %103 = arith.negf %102 : vector<8x128xf32>
    %104 = math.exp %103 : vector<8x128xf32>
    %cst_33 = arith.constant 1.000000e+00 : f32
    %105 = vector.broadcast %cst_33 : f32 to vector<8x128xf32>
    %106 = arith.addf %105, %104 : vector<8x128xf32>
    %107 = arith.divf %105, %106 : vector<8x128xf32>
    %108 = vector.extract_strided_slice %89 {offsets = [0, 256], sizes = [8, 128], strides = [1, 1]} : vector<8x384xf32> to vector<8x128xf32>
    %109 = vector.extract_strided_slice %91 {offsets = [0, 256], sizes = [8, 128], strides = [1, 1]} : vector<8x384xf32> to vector<8x128xf32>
    %110 = arith.addf %109, %13 : vector<8x128xf32>
    %111 = arith.mulf %99, %110 : vector<8x128xf32>
    %112 = arith.addf %108, %111 : vector<8x128xf32>
    %113 = math.tanh %112 : vector<8x128xf32>
    %cst_34 = arith.constant 1.000000e+00 : f32
    %114 = vector.broadcast %cst_34 : f32 to vector<8x128xf32>
    %115 = arith.subf %114, %107 : vector<8x128xf32>
    %116 = arith.mulf %115, %113 : vector<8x128xf32>
    %117 = arith.mulf %107, %83 : vector<8x128xf32>
    %118 = arith.addf %116, %117 : vector<8x128xf32>
    %119 = arith.index_cast %87 : i32 to index
    %c0_35 = arith.constant 0 : index
    %120 = vector.load %arg14[%119, %c0_35] : memref<32x128xf32, #tpu.memory_space<vmem>>, vector<8x128xf32>
    tpu.vector_store %arg14[%119, %c0_35], %118 {strides = array<i32>} : memref<32x128xf32, #tpu.memory_space<vmem>>, vector<8x128xf32>,
    %c3_i32 = arith.constant 3 : i32
    %c8_i32_36 = arith.constant 8 : i32
    %121 = arith.muli %c3_i32, %c8_i32_36 : i32
    %122 = tpu.assume_multiple %121, 8 : i32
    %123 = arith.index_cast %122 : i32 to index
    %c0_37 = arith.constant 0 : index
    %124 = vector.load %arg13[%123, %c0_37] : memref<32x384xf32, #tpu.memory_space<vmem>>, vector<8x384xf32>
    %125 = arith.truncf %118 : vector<8x128xf32> to vector<8x128xbf16>
    %cst_38 = arith.constant dense<0.000000e+00> : vector<8x384xf32>
    %126 = tpu.matmul %125, %10, %cst_38 {dimension_numbers = #tpu.dot_dimension_numbers<[1], [0], [0], [1], [0, 0, 1, 1], [], []>} : vector<8x128xbf16>, vector<128x384xbf16>, vector<8x384xf32> -> vector<8x384xf32>
    %127 = vector.extract_strided_slice %124 {offsets = [0, 0], sizes = [8, 128], strides = [1, 1]} : vector<8x384xf32> to vector<8x128xf32>
    %128 = vector.extract_strided_slice %126 {offsets = [0, 0], sizes = [8, 128], strides = [1, 1]} : vector<8x384xf32> to vector<8x128xf32>
    %129 = arith.addf %127, %128 : vector<8x128xf32>
    %130 = arith.negf %129 : vector<8x128xf32>
    %131 = math.exp %130 : vector<8x128xf32>
    %cst_39 = arith.constant 1.000000e+00 : f32
    %132 = vector.broadcast %cst_39 : f32 to vector<8x128xf32>
    %133 = arith.addf %132, %131 : vector<8x128xf32>
    %134 = arith.divf %132, %133 : vector<8x128xf32>
    %135 = vector.extract_strided_slice %124 {offsets = [0, 128], sizes = [8, 128], strides = [1, 1]} : vector<8x384xf32> to vector<8x128xf32>
    %136 = vector.extract_strided_slice %126 {offsets = [0, 128], sizes = [8, 128], strides = [1, 1]} : vector<8x384xf32> to vector<8x128xf32>
    %137 = arith.addf %135, %136 : vector<8x128xf32>
    %138 = arith.negf %137 : vector<8x128xf32>
    %139 = math.exp %138 : vector<8x128xf32>
    %cst_40 = arith.constant 1.000000e+00 : f32
    %140 = vector.broadcast %cst_40 : f32 to vector<8x128xf32>
    %141 = arith.addf %140, %139 : vector<8x128xf32>
    %142 = arith.divf %140, %141 : vector<8x128xf32>
    %143 = vector.extract_strided_slice %124 {offsets = [0, 256], sizes = [8, 128], strides = [1, 1]} : vector<8x384xf32> to vector<8x128xf32>
    %144 = vector.extract_strided_slice %126 {offsets = [0, 256], sizes = [8, 128], strides = [1, 1]} : vector<8x384xf32> to vector<8x128xf32>
    %145 = arith.addf %144, %13 : vector<8x128xf32>
    %146 = arith.mulf %134, %145 : vector<8x128xf32>
    %147 = arith.addf %143, %146 : vector<8x128xf32>
    %148 = math.tanh %147 : vector<8x128xf32>
    %cst_41 = arith.constant 1.000000e+00 : f32
    %149 = vector.broadcast %cst_41 : f32 to vector<8x128xf32>
    %150 = arith.subf %149, %142 : vector<8x128xf32>
    %151 = arith.mulf %150, %148 : vector<8x128xf32>
    %152 = arith.mulf %142, %118 : vector<8x128xf32>
    %153 = arith.addf %151, %152 : vector<8x128xf32>
    %154 = arith.index_cast %122 : i32 to index
    %c0_42 = arith.constant 0 : index
    %155 = vector.load %arg14[%154, %c0_42] : memref<32x128xf32, #tpu.memory_space<vmem>>, vector<8x128xf32>
    tpu.vector_store %arg14[%154, %c0_42], %153 {strides = array<i32>} : memref<32x128xf32, #tpu.memory_space<vmem>>, vector<8x128xf32>,
    %c4_i32 = arith.constant 4 : i32
    %c0_43 = arith.constant 0 : index
    %c0_44 = arith.constant 0 : index
    %c0_45 = arith.constant 0 : index
    %156 = vector.load %arg15[%c0_43, %c0_44, %c0_45] : memref<2x8x128xf32, #tpu.memory_space<vmem>>, vector<1x8x128xf32>
    %157 = vector.shape_cast %156 : vector<1x8x128xf32> to vector<8x128xf32>
    %158 = vector.shape_cast %153 : vector<8x128xf32> to vector<1x8x128xf32>
    tpu.vector_store %arg15[%c0_43, %c0_44, %c0_45], %158 {strides = array<i32>} : memref<2x8x128xf32, #tpu.memory_space<vmem>>, vector<1x8x128xf32>,
    %c0_46 = arith.constant 0 : index
    %c0_47 = arith.constant 0 : index
    %159 = vector.load %arg14[%c0_46, %c0_47] : memref<32x128xf32, #tpu.memory_space<vmem>>, vector<32x128xf32>
    %160 = arith.truncf %159 : vector<32x128xf32> to vector<32x128xbf16>
    %c0_48 = arith.constant 0 : index
    %c0_49 = arith.constant 0 : index
    %161 = vector.load %arg6[%c0_48, %c0_49] : memref<128x384xbf16, #tpu.memory_space<vmem>>, vector<128x384xbf16>
    %cst_50 = arith.constant dense<0.000000e+00> : vector<32x384xf32>
    %162 = tpu.matmul %160, %161, %cst_50 {dimension_numbers = #tpu.dot_dimension_numbers<[1], [0], [0], [1], [0, 0, 1, 1], [], []>} : vector<32x128xbf16>, vector<128x384xbf16>, vector<32x384xf32> -> vector<32x384xf32>
    %c0_51 = arith.constant 0 : index
    %c0_52 = arith.constant 0 : index
    %163 = vector.load %arg8[%c0_51, %c0_52] : memref<1x384xf32, #tpu.memory_space<vmem>>, vector<1x384xf32>
    %164 = vector.broadcast %163 : vector<1x384xf32> to vector<32x384xf32>
    %165 = arith.addf %162, %164 : vector<32x384xf32>
    %c0_53 = arith.constant 0 : index
    %c0_54 = arith.constant 0 : index
    %166 = vector.load %arg13[%c0_53, %c0_54] : memref<32x384xf32, #tpu.memory_space<vmem>>, vector<32x384xf32>
    tpu.vector_store %arg13[%c0_53, %c0_54], %165 {strides = array<i32>} : memref<32x384xf32, #tpu.memory_space<vmem>>, vector<32x384xf32>,
    %c0_55 = arith.constant 0 : index
    %c0_56 = arith.constant 0 : index
    %167 = vector.load %arg7[%c0_55, %c0_56] : memref<128x384xbf16, #tpu.memory_space<vmem>>, vector<128x384xbf16>
    %c0_57 = arith.constant 0 : index
    %c0_58 = arith.constant 0 : index
    %168 = vector.load %arg9[%c0_57, %c0_58] : memref<1x128xf32, #tpu.memory_space<vmem>>, vector<1x128xf32>
    %169 = vector.shape_cast %168 : vector<1x128xf32> to vector<1x128xf32>
    %170 = vector.broadcast %169 : vector<1x128xf32> to vector<8x128xf32>
    %c1 = arith.constant 1 : index
    %c0_59 = arith.constant 0 : index
    %c0_60 = arith.constant 0 : index
    %171 = vector.load %arg15[%c1, %c0_59, %c0_60] : memref<2x8x128xf32, #tpu.memory_space<vmem>>, vector<1x8x128xf32>
    %172 = vector.shape_cast %171 : vector<1x8x128xf32> to vector<8x128xf32>
    %c0_i32_61 = arith.constant 0 : i32
    %c8_i32_62 = arith.constant 8 : i32
    %173 = arith.muli %c0_i32_61, %c8_i32_62 : i32
    %174 = tpu.assume_multiple %173, 8 : i32
    %175 = arith.index_cast %174 : i32 to index
    %c0_63 = arith.constant 0 : index
    %176 = vector.load %arg13[%175, %c0_63] : memref<32x384xf32, #tpu.memory_space<vmem>>, vector<8x384xf32>
    %177 = arith.truncf %172 : vector<8x128xf32> to vector<8x128xbf16>
    %cst_64 = arith.constant dense<0.000000e+00> : vector<8x384xf32>
    %178 = tpu.matmul %177, %167, %cst_64 {dimension_numbers = #tpu.dot_dimension_numbers<[1], [0], [0], [1], [0, 0, 1, 1], [], []>} : vector<8x128xbf16>, vector<128x384xbf16>, vector<8x384xf32> -> vector<8x384xf32>
    %179 = vector.extract_strided_slice %176 {offsets = [0, 0], sizes = [8, 128], strides = [1, 1]} : vector<8x384xf32> to vector<8x128xf32>
    %180 = vector.extract_strided_slice %178 {offsets = [0, 0], sizes = [8, 128], strides = [1, 1]} : vector<8x384xf32> to vector<8x128xf32>
    %181 = arith.addf %179, %180 : vector<8x128xf32>
    %182 = arith.negf %181 : vector<8x128xf32>
    %183 = math.exp %182 : vector<8x128xf32>
    %cst_65 = arith.constant 1.000000e+00 : f32
    %184 = vector.broadcast %cst_65 : f32 to vector<8x128xf32>
    %185 = arith.addf %184, %183 : vector<8x128xf32>
    %186 = arith.divf %184, %185 : vector<8x128xf32>
    %187 = vector.extract_strided_slice %176 {offsets = [0, 128], sizes = [8, 128], strides = [1, 1]} : vector<8x384xf32> to vector<8x128xf32>
    %188 = vector.extract_strided_slice %178 {offsets = [0, 128], sizes = [8, 128], strides = [1, 1]} : vector<8x384xf32> to vector<8x128xf32>
    %189 = arith.addf %187, %188 : vector<8x128xf32>
    %190 = arith.negf %189 : vector<8x128xf32>
    %191 = math.exp %190 : vector<8x128xf32>
    %cst_66 = arith.constant 1.000000e+00 : f32
    %192 = vector.broadcast %cst_66 : f32 to vector<8x128xf32>
    %193 = arith.addf %192, %191 : vector<8x128xf32>
    %194 = arith.divf %192, %193 : vector<8x128xf32>
    %195 = vector.extract_strided_slice %176 {offsets = [0, 256], sizes = [8, 128], strides = [1, 1]} : vector<8x384xf32> to vector<8x128xf32>
    %196 = vector.extract_strided_slice %178 {offsets = [0, 256], sizes = [8, 128], strides = [1, 1]} : vector<8x384xf32> to vector<8x128xf32>
    %197 = arith.addf %196, %170 : vector<8x128xf32>
    %198 = arith.mulf %186, %197 : vector<8x128xf32>
    %199 = arith.addf %195, %198 : vector<8x128xf32>
    %200 = math.tanh %199 : vector<8x128xf32>
    %cst_67 = arith.constant 1.000000e+00 : f32
    %201 = vector.broadcast %cst_67 : f32 to vector<8x128xf32>
    %202 = arith.subf %201, %194 : vector<8x128xf32>
    %203 = arith.mulf %202, %200 : vector<8x128xf32>
    %204 = arith.mulf %194, %172 : vector<8x128xf32>
    %205 = arith.addf %203, %204 : vector<8x128xf32>
    %206 = arith.index_cast %174 : i32 to index
    %c0_68 = arith.constant 0 : index
    %207 = vector.load %arg14[%206, %c0_68] : memref<32x128xf32, #tpu.memory_space<vmem>>, vector<8x128xf32>
    tpu.vector_store %arg14[%206, %c0_68], %205 {strides = array<i32>} : memref<32x128xf32, #tpu.memory_space<vmem>>, vector<8x128xf32>,
    %c1_i32_69 = arith.constant 1 : i32
    %c8_i32_70 = arith.constant 8 : i32
    %208 = arith.muli %c1_i32_69, %c8_i32_70 : i32
    %209 = tpu.assume_multiple %208, 8 : i32
    %210 = arith.index_cast %209 : i32 to index
    %c0_71 = arith.constant 0 : index
    %211 = vector.load %arg13[%210, %c0_71] : memref<32x384xf32, #tpu.memory_space<vmem>>, vector<8x384xf32>
    %212 = arith.truncf %205 : vector<8x128xf32> to vector<8x128xbf16>
    %cst_72 = arith.constant dense<0.000000e+00> : vector<8x384xf32>
    %213 = tpu.matmul %212, %167, %cst_72 {dimension_numbers = #tpu.dot_dimension_numbers<[1], [0], [0], [1], [0, 0, 1, 1], [], []>} : vector<8x128xbf16>, vector<128x384xbf16>, vector<8x384xf32> -> vector<8x384xf32>
    %214 = vector.extract_strided_slice %211 {offsets = [0, 0], sizes = [8, 128], strides = [1, 1]} : vector<8x384xf32> to vector<8x128xf32>
    %215 = vector.extract_strided_slice %213 {offsets = [0, 0], sizes = [8, 128], strides = [1, 1]} : vector<8x384xf32> to vector<8x128xf32>
    %216 = arith.addf %214, %215 : vector<8x128xf32>
    %217 = arith.negf %216 : vector<8x128xf32>
    %218 = math.exp %217 : vector<8x128xf32>
    %cst_73 = arith.constant 1.000000e+00 : f32
    %219 = vector.broadcast %cst_73 : f32 to vector<8x128xf32>
    %220 = arith.addf %219, %218 : vector<8x128xf32>
    %221 = arith.divf %219, %220 : vector<8x128xf32>
    %222 = vector.extract_strided_slice %211 {offsets = [0, 128], sizes = [8, 128], strides = [1, 1]} : vector<8x384xf32> to vector<8x128xf32>
    %223 = vector.extract_strided_slice %213 {offsets = [0, 128], sizes = [8, 128], strides = [1, 1]} : vector<8x384xf32> to vector<8x128xf32>
    %224 = arith.addf %222, %223 : vector<8x128xf32>
    %225 = arith.negf %224 : vector<8x128xf32>
    %226 = math.exp %225 : vector<8x128xf32>
    %cst_74 = arith.constant 1.000000e+00 : f32
    %227 = vector.broadcast %cst_74 : f32 to vector<8x128xf32>
    %228 = arith.addf %227, %226 : vector<8x128xf32>
    %229 = arith.divf %227, %228 : vector<8x128xf32>
    %230 = vector.extract_strided_slice %211 {offsets = [0, 256], sizes = [8, 128], strides = [1, 1]} : vector<8x384xf32> to vector<8x128xf32>
    %231 = vector.extract_strided_slice %213 {offsets = [0, 256], sizes = [8, 128], strides = [1, 1]} : vector<8x384xf32> to vector<8x128xf32>
    %232 = arith.addf %231, %170 : vector<8x128xf32>
    %233 = arith.mulf %221, %232 : vector<8x128xf32>
    %234 = arith.addf %230, %233 : vector<8x128xf32>
    %235 = math.tanh %234 : vector<8x128xf32>
    %cst_75 = arith.constant 1.000000e+00 : f32
    %236 = vector.broadcast %cst_75 : f32 to vector<8x128xf32>
    %237 = arith.subf %236, %229 : vector<8x128xf32>
    %238 = arith.mulf %237, %235 : vector<8x128xf32>
    %239 = arith.mulf %229, %205 : vector<8x128xf32>
    %240 = arith.addf %238, %239 : vector<8x128xf32>
    %241 = arith.index_cast %209 : i32 to index
    %c0_76 = arith.constant 0 : index
    %242 = vector.load %arg14[%241, %c0_76] : memref<32x128xf32, #tpu.memory_space<vmem>>, vector<8x128xf32>
    tpu.vector_store %arg14[%241, %c0_76], %240 {strides = array<i32>} : memref<32x128xf32, #tpu.memory_space<vmem>>, vector<8x128xf32>,
    %c2_i32_77 = arith.constant 2 : i32
    %c8_i32_78 = arith.constant 8 : i32
    %243 = arith.muli %c2_i32_77, %c8_i32_78 : i32
    %244 = tpu.assume_multiple %243, 8 : i32
    %245 = arith.index_cast %244 : i32 to index
    %c0_79 = arith.constant 0 : index
    %246 = vector.load %arg13[%245, %c0_79] : memref<32x384xf32, #tpu.memory_space<vmem>>, vector<8x384xf32>
    %247 = arith.truncf %240 : vector<8x128xf32> to vector<8x128xbf16>
    %cst_80 = arith.constant dense<0.000000e+00> : vector<8x384xf32>
    %248 = tpu.matmul %247, %167, %cst_80 {dimension_numbers = #tpu.dot_dimension_numbers<[1], [0], [0], [1], [0, 0, 1, 1], [], []>} : vector<8x128xbf16>, vector<128x384xbf16>, vector<8x384xf32> -> vector<8x384xf32>
    %249 = vector.extract_strided_slice %246 {offsets = [0, 0], sizes = [8, 128], strides = [1, 1]} : vector<8x384xf32> to vector<8x128xf32>
    %250 = vector.extract_strided_slice %248 {offsets = [0, 0], sizes = [8, 128], strides = [1, 1]} : vector<8x384xf32> to vector<8x128xf32>
    %251 = arith.addf %249, %250 : vector<8x128xf32>
    %252 = arith.negf %251 : vector<8x128xf32>
    %253 = math.exp %252 : vector<8x128xf32>
    %cst_81 = arith.constant 1.000000e+00 : f32
    %254 = vector.broadcast %cst_81 : f32 to vector<8x128xf32>
    %255 = arith.addf %254, %253 : vector<8x128xf32>
    %256 = arith.divf %254, %255 : vector<8x128xf32>
    %257 = vector.extract_strided_slice %246 {offsets = [0, 128], sizes = [8, 128], strides = [1, 1]} : vector<8x384xf32> to vector<8x128xf32>
    %258 = vector.extract_strided_slice %248 {offsets = [0, 128], sizes = [8, 128], strides = [1, 1]} : vector<8x384xf32> to vector<8x128xf32>
    %259 = arith.addf %257, %258 : vector<8x128xf32>
    %260 = arith.negf %259 : vector<8x128xf32>
    %261 = math.exp %260 : vector<8x128xf32>
    %cst_82 = arith.constant 1.000000e+00 : f32
    %262 = vector.broadcast %cst_82 : f32 to vector<8x128xf32>
    %263 = arith.addf %262, %261 : vector<8x128xf32>
    %264 = arith.divf %262, %263 : vector<8x128xf32>
    %265 = vector.extract_strided_slice %246 {offsets = [0, 256], sizes = [8, 128], strides = [1, 1]} : vector<8x384xf32> to vector<8x128xf32>
    %266 = vector.extract_strided_slice %248 {offsets = [0, 256], sizes = [8, 128], strides = [1, 1]} : vector<8x384xf32> to vector<8x128xf32>
    %267 = arith.addf %266, %170 : vector<8x128xf32>
    %268 = arith.mulf %256, %267 : vector<8x128xf32>
    %269 = arith.addf %265, %268 : vector<8x128xf32>
    %270 = math.tanh %269 : vector<8x128xf32>
    %cst_83 = arith.constant 1.000000e+00 : f32
    %271 = vector.broadcast %cst_83 : f32 to vector<8x128xf32>
    %272 = arith.subf %271, %264 : vector<8x128xf32>
    %273 = arith.mulf %272, %270 : vector<8x128xf32>
    %274 = arith.mulf %264, %240 : vector<8x128xf32>
    %275 = arith.addf %273, %274 : vector<8x128xf32>
    %276 = arith.index_cast %244 : i32 to index
    %c0_84 = arith.constant 0 : index
    %277 = vector.load %arg14[%276, %c0_84] : memref<32x128xf32, #tpu.memory_space<vmem>>, vector<8x128xf32>
    tpu.vector_store %arg14[%276, %c0_84], %275 {strides = array<i32>} : memref<32x128xf32, #tpu.memory_space<vmem>>, vector<8x128xf32>,
    %c3_i32_85 = arith.constant 3 : i32
    %c8_i32_86 = arith.constant 8 : i32
    %278 = arith.muli %c3_i32_85, %c8_i32_86 : i32
    %279 = tpu.assume_multiple %278, 8 : i32
    %280 = arith.index_cast %279 : i32 to index
    %c0_87 = arith.constant 0 : index
    %281 = vector.load %arg13[%280, %c0_87] : memref<32x384xf32, #tpu.memory_space<vmem>>, vector<8x384xf32>
    %282 = arith.truncf %275 : vector<8x128xf32> to vector<8x128xbf16>
    %cst_88 = arith.constant dense<0.000000e+00> : vector<8x384xf32>
    %283 = tpu.matmul %282, %167, %cst_88 {dimension_numbers = #tpu.dot_dimension_numbers<[1], [0], [0], [1], [0, 0, 1, 1], [], []>} : vector<8x128xbf16>, vector<128x384xbf16>, vector<8x384xf32> -> vector<8x384xf32>
    %284 = vector.extract_strided_slice %281 {offsets = [0, 0], sizes = [8, 128], strides = [1, 1]} : vector<8x384xf32> to vector<8x128xf32>
    %285 = vector.extract_strided_slice %283 {offsets = [0, 0], sizes = [8, 128], strides = [1, 1]} : vector<8x384xf32> to vector<8x128xf32>
    %286 = arith.addf %284, %285 : vector<8x128xf32>
    %287 = arith.negf %286 : vector<8x128xf32>
    %288 = math.exp %287 : vector<8x128xf32>
    %cst_89 = arith.constant 1.000000e+00 : f32
    %289 = vector.broadcast %cst_89 : f32 to vector<8x128xf32>
    %290 = arith.addf %289, %288 : vector<8x128xf32>
    %291 = arith.divf %289, %290 : vector<8x128xf32>
    %292 = vector.extract_strided_slice %281 {offsets = [0, 128], sizes = [8, 128], strides = [1, 1]} : vector<8x384xf32> to vector<8x128xf32>
    %293 = vector.extract_strided_slice %283 {offsets = [0, 128], sizes = [8, 128], strides = [1, 1]} : vector<8x384xf32> to vector<8x128xf32>
    %294 = arith.addf %292, %293 : vector<8x128xf32>
    %295 = arith.negf %294 : vector<8x128xf32>
    %296 = math.exp %295 : vector<8x128xf32>
    %cst_90 = arith.constant 1.000000e+00 : f32
    %297 = vector.broadcast %cst_90 : f32 to vector<8x128xf32>
    %298 = arith.addf %297, %296 : vector<8x128xf32>
    %299 = arith.divf %297, %298 : vector<8x128xf32>
    %300 = vector.extract_strided_slice %281 {offsets = [0, 256], sizes = [8, 128], strides = [1, 1]} : vector<8x384xf32> to vector<8x128xf32>
    %301 = vector.extract_strided_slice %283 {offsets = [0, 256], sizes = [8, 128], strides = [1, 1]} : vector<8x384xf32> to vector<8x128xf32>
    %302 = arith.addf %301, %170 : vector<8x128xf32>
    %303 = arith.mulf %291, %302 : vector<8x128xf32>
    %304 = arith.addf %300, %303 : vector<8x128xf32>
    %305 = math.tanh %304 : vector<8x128xf32>
    %cst_91 = arith.constant 1.000000e+00 : f32
    %306 = vector.broadcast %cst_91 : f32 to vector<8x128xf32>
    %307 = arith.subf %306, %299 : vector<8x128xf32>
    %308 = arith.mulf %307, %305 : vector<8x128xf32>
    %309 = arith.mulf %299, %275 : vector<8x128xf32>
    %310 = arith.addf %308, %309 : vector<8x128xf32>
    %311 = arith.index_cast %279 : i32 to index
    %c0_92 = arith.constant 0 : index
    %312 = vector.load %arg14[%311, %c0_92] : memref<32x128xf32, #tpu.memory_space<vmem>>, vector<8x128xf32>
    tpu.vector_store %arg14[%311, %c0_92], %310 {strides = array<i32>} : memref<32x128xf32, #tpu.memory_space<vmem>>, vector<8x128xf32>,
    %c4_i32_93 = arith.constant 4 : i32
    %c1_94 = arith.constant 1 : index
    %c0_95 = arith.constant 0 : index
    %c0_96 = arith.constant 0 : index
    %313 = vector.load %arg15[%c1_94, %c0_95, %c0_96] : memref<2x8x128xf32, #tpu.memory_space<vmem>>, vector<1x8x128xf32>
    %314 = vector.shape_cast %313 : vector<1x8x128xf32> to vector<8x128xf32>
    %315 = vector.shape_cast %310 : vector<8x128xf32> to vector<1x8x128xf32>
    tpu.vector_store %arg15[%c1_94, %c0_95, %c0_96], %315 {strides = array<i32>} : memref<2x8x128xf32, #tpu.memory_space<vmem>>, vector<1x8x128xf32>,
    %c0_97 = arith.constant 0 : index
    %c0_98 = arith.constant 0 : index
    %316 = vector.load %arg14[%c0_97, %c0_98] : memref<32x128xf32, #tpu.memory_space<vmem>>, vector<32x128xf32>
    %317 = arith.truncf %316 : vector<32x128xf32> to vector<32x128xbf16>
    %c0_99 = arith.constant 0 : index
    %c0_100 = arith.constant 0 : index
    %318 = vector.load %arg10[%c0_99, %c0_100] : memref<128x128xbf16, #tpu.memory_space<vmem>>, vector<128x128xbf16>
    %cst_101 = arith.constant dense<0.000000e+00> : vector<32x128xf32>
    %319 = tpu.matmul %317, %318, %cst_101 {dimension_numbers = #tpu.dot_dimension_numbers<[1], [0], [0], [1], [0, 0, 1, 1], [], []>} : vector<32x128xbf16>, vector<128x128xbf16>, vector<32x128xf32> -> vector<32x128xf32>
    %c0_102 = arith.constant 0 : index
    %c0_103 = arith.constant 0 : index
    %320 = vector.load %arg11[%c0_102, %c0_103] : memref<1x128xf32, #tpu.memory_space<vmem>>, vector<1x128xf32>
    %321 = vector.broadcast %320 : vector<1x128xf32> to vector<32x128xf32>
    %322 = arith.addf %319, %321 : vector<32x128xf32>
    %c0_104 = arith.constant 0 : index
    %c0_105 = arith.constant 0 : index
    %323 = vector.load %arg12[%c0_104, %c0_105] : memref<32x128xf32, #tpu.memory_space<vmem>>, vector<32x128xf32>
    tpu.vector_store %arg12[%c0_104, %c0_105], %322 {strides = array<i32>} : memref<32x128xf32, #tpu.memory_space<vmem>>, vector<32x128xf32>,
    return
  }
  func.func @transform_0(%arg0: i32) -> (i32, i32) {
    %c0_i32 = arith.constant 0 : i32
    %c0_i32_0 = arith.constant 0 : i32
    return %arg0, %c0_i32 : i32, i32
  }
  func.func @transform_1(%arg0: i32) -> (i32, i32) {
    %c0_i32 = arith.constant 0 : i32
    %c0_i32_0 = arith.constant 0 : i32
    %c0_i32_1 = arith.constant 0 : i32
    return %c0_i32, %c0_i32_0 : i32, i32
  }
  func.func @transform_2(%arg0: i32) -> (i32, i32) {
    %c0_i32 = arith.constant 0 : i32
    %c0_i32_0 = arith.constant 0 : i32
    %c0_i32_1 = arith.constant 0 : i32
    return %c0_i32, %c0_i32_0 : i32, i32
  }
  func.func @transform_3(%arg0: i32) -> (i32, i32) {
    %c0_i32 = arith.constant 0 : i32
    %c0_i32_0 = arith.constant 0 : i32
    %c0_i32_1 = arith.constant 0 : i32
    return %c0_i32, %c0_i32_0 : i32, i32
  }
  func.func @transform_4(%arg0: i32) -> (i32, i32) {
    %c0_i32 = arith.constant 0 : i32
    %c0_i32_0 = arith.constant 0 : i32
    %c0_i32_1 = arith.constant 0 : i32
    return %c0_i32, %c0_i32_0 : i32, i32
  }
  func.func @transform_5(%arg0: i32) -> (i32, i32) {
    %c0_i32 = arith.constant 0 : i32
    %c0_i32_0 = arith.constant 0 : i32
    %c0_i32_1 = arith.constant 0 : i32
    return %c0_i32, %c0_i32_0 : i32, i32
  }
  func.func @transform_6(%arg0: i32) -> (i32, i32) {
    %c0_i32 = arith.constant 0 : i32
    %c0_i32_0 = arith.constant 0 : i32
    %c0_i32_1 = arith.constant 0 : i32
    return %c0_i32, %c0_i32_0 : i32, i32
  }
  func.func @transform_7(%arg0: i32) -> (i32, i32) {
    %c0_i32 = arith.constant 0 : i32
    %c0_i32_0 = arith.constant 0 : i32
    %c0_i32_1 = arith.constant 0 : i32
    return %c0_i32, %c0_i32_0 : i32, i32
  }
  func.func @transform_8(%arg0: i32) -> (i32, i32) {
    %c0_i32 = arith.constant 0 : i32
    %c0_i32_0 = arith.constant 0 : i32
    %c0_i32_1 = arith.constant 0 : i32
    return %c0_i32, %c0_i32_0 : i32, i32
  }
  func.func @transform_9(%arg0: i32) -> (i32, i32) {
    %c0_i32 = arith.constant 0 : i32
    %c0_i32_0 = arith.constant 0 : i32
    %c0_i32_1 = arith.constant 0 : i32
    return %c0_i32, %c0_i32_0 : i32, i32
  }
  func.func @transform_10(%arg0: i32) -> (i32, i32) {
    %c0_i32 = arith.constant 0 : i32
    %c0_i32_0 = arith.constant 0 : i32
    %c0_i32_1 = arith.constant 0 : i32
    return %c0_i32, %c0_i32_0 : i32, i32
  }
  func.func @transform_11(%arg0: i32) -> (i32, i32) {
    %c0_i32 = arith.constant 0 : i32
    %c0_i32_0 = arith.constant 0 : i32
    return %arg0, %c0_i32 : i32, i32
  }
}

</mosaic_0001>

<llo_original>
// kernel: _lambda_.1
$region0: #{_lambda_.1}
  #allocation0 [shape = 'u32[]', space=smem, size = 0x4, offset = 0x4, fixed_abs, tag = 'smem constant byte address 0x4 - core index']
  #allocation1 [shape = 'u32[144,128]{1,0:T(1,128)}', space=vmem, size = 0x12000, scoped, tag = 'internal scratch']
  #allocation2 [shape = 'f32[32,384]{1,0:T(8,128)}', space=vmem, size = 0xc000, scoped, tag = 'scratch operand']
  #allocation3 [shape = 'f32[32,128]{1,0:T(8,128)}', space=vmem, size = 0x4000, scoped, tag = 'scratch operand']
  #allocation4 [shape = 'f32[2,8,128]{2,1,0:T(8,128)}', space=vmem, size = 0x2000, scoped, tag = 'scratch operand']
  %s0 = inlined_call_operand.vmem [shape: bf16[64,128], index: 0, kind: input, shape index: {}]
  %s1 = inlined_call_operand.vmem [shape: bf16[128,384], index: 1, kind: input, shape index: {}]
  %s2 = inlined_call_operand.vmem [shape: bf16[128,384], index: 2, kind: input, shape index: {}]
  %s3 = inlined_call_operand.vmem [shape: f32[1,384], index: 3, kind: input, shape index: {}]
  %s4 = inlined_call_operand.vmem [shape: f32[1,128], index: 4, kind: input, shape index: {}]
  %s5 = inlined_call_operand.hbm [shape: bf16[128,384], index: 5, kind: input, shape index: {}]
  %s6 = inlined_call_operand.hbm [shape: bf16[128,384], index: 6, kind: input, shape index: {}]
  %s7 = inlined_call_operand.vmem [shape: f32[1,384], index: 7, kind: input, shape index: {}]
  %s8 = inlined_call_operand.vmem [shape: f32[1,128], index: 8, kind: input, shape index: {}]
  %s9 = inlined_call_operand.hbm [shape: bf16[128,128], index: 9, kind: input, shape index: {}]
  %s10 = inlined_call_operand.vmem [shape: f32[1,128], index: 10, kind: input, shape index: {}]
  %s11 = inlined_call_operand.vmem [shape: f32[64,128], index: 11, kind: output, shape index: {}]
  %s12 = sld [smem:[#allocation0]]
  $region93: #{_lambda_.1} parent=0
    _
  %s14 = ssub.s32 1, %s12
  %s15 = scalar_select 0, %s14, %s12
  $region1: #{_lambda_.1} parent=0
    #allocation5 [shape = 'u8[98304]{0}', space=vmem, size = 0x18000, scoped, tag = 'input window, operand 5, single buffered']
    #allocation6 [shape = 's32[2]{0}', space=sflag, size = 0x8, scoped, tag = 'scoped memory for _lambda_.1']
    #allocation7 [shape = 'u8[98304]{0}', space=vmem, size = 0x18000, scoped, tag = 'input window, operand 6, single buffered']
    #allocation8 [shape = 's32[1]{0}', space=sflag, size = 0x4, scoped, tag = 'scoped memory for _lambda_.1']
    #allocation9 [shape = 'u8[32768]{0}', space=vmem, size = 0x8000, scoped, tag = 'input window, operand 9, single buffered']
    %16 = vsyncpa [#allocation6], 0
    %17 = vsyncpa [#allocation8], 0
    loop: start=0, step=1, limit=4
    $region2: #{_lambda_.1} parent=1 // loop_pre_header
      _
    $region3: #{_lambda_.1} parent=1 // loop_header
      %s19 = sphi 0, %s23
      %p20 = scmp.ge.s32.totalorder %s19, 4
      %s29 = sphi 0, %s31
      %s32 = sphi 0, %s29
      %s33 = sphi 0, %s32
      %s49 = sphi 0, %s33
      %s53 = sphi 0, %s53
      %s55 = sphi 0, %s53
      %s56 = sphi 0, %s55
      %s70 = sphi 0, %s56
      %s74 = sphi 0, %s74
      %s76 = sphi 0, %s74
      %s77 = sphi 0, %s76
      %s91 = sphi 0, %s77
      %s95 = sphi 0, %s95
      %s97 = sphi 0, %s95
      %s98 = sphi 0, %s97
      %s112 = sphi 0, %s98
      %s116 = sphi 0, %s116
      %s118 = sphi 0, %s116
      %s119 = sphi 0, %s118
      %s133 = sphi 0, %s119
      %s137 = sphi 0, %s137
      %s139 = sphi 0, %s137
      %s140 = sphi 0, %s139
      %s154 = sphi 0, %s140
      %s158 = sphi 0, %s158
      %s160 = sphi 0, %s158
      %s161 = sphi 0, %s160
      %s175 = sphi 0, %s161
      %s179 = sphi 0, %s179
      %s181 = sphi 0, %s179
      %s182 = sphi 0, %s181
      %s196 = sphi 0, %s182
      %s200 = sphi 0, %s200
      %s202 = sphi 0, %s200
      %s203 = sphi 0, %s202
      %s217 = sphi 0, %s203
      %s221 = sphi 0, %s221
      %s223 = sphi 0, %s221
      %s224 = sphi 0, %s223
      %s238 = sphi 0, %s224
      %s242 = sphi 0, %s242
      %s244 = sphi 0, %s242
      %s245 = sphi 0, %s244
      %s259 = sphi 0, %s245
      %s265 = sphi 0, %s267
      %s268 = sphi 0, %s265
      %s269 = sphi 0, %s268
      %s285 = sphi 0, %s269
    $region4: #{_lambda_.1} parent=1 // loop_header_branch
      %22 = sbr.rel (%p20) target = $region8
    $region5: #{_lambda_.1} parent=1 // loop_body
      %s24 = ssub.s32 %s19, 1
      %s25 = ssub.s32 %s19, 2
      %s26 = sadd.s32 %s19, 1
      %s27 = ssub.s32 %s19, %s26
      %p28 = scmp.eq.s32.totalorder %s27, 0
      %s30 = sadd.s32 %s29, 1
      %s31 = scalar_select %p28, %s29, %s30
      %p34 = pneg %p28
      %p35 = scmp.eq.s32.totalorder %s19, 1
      %p36 = por %p34, %p35
      %p37 = scmp.ne.s32.totalorder %s29, %s32
      %p38 = scmp.eq.s32.totalorder %s19, 0
      %p39 = por %p37, %p38
      %p40 = scmp.ne.s32.totalorder %s29, %s32
      %p41 = scmp.eq.s32.totalorder %s24, 1
      %p42 = por %p40, %p41
      %p43 = scmp.ne.s32.totalorder %s32, %s33
      %p44 = scmp.eq.s32.totalorder %s24, 0
      %p45 = por %p43, %p44
      %p46 = scmp.ne.s32.totalorder %s32, %s33
      %p47 = scmp.eq.s32.totalorder %s25, 1
      %p48 = por %p46, %p47
      %p50 = scmp.ne.s32.totalorder %s33, %s49
      %p51 = scmp.eq.s32.totalorder %s25, 0
      %p52 = por %p50, %p51
      %s54 = sadd.s32 %s53, 1
      %p57 = scmp.eq.s32.totalorder %s19, 1
      %p58 = scmp.ne.s32.totalorder %s53, %s55
      %p59 = scmp.eq.s32.totalorder %s19, 0
      %p60 = por %p58, %p59
      %p61 = scmp.ne.s32.totalorder %s53, %s55
      %p62 = scmp.eq.s32.totalorder %s24, 1
      %p63 = por %p61, %p62
      %p64 = scmp.ne.s32.totalorder %s55, %s56
      %p65 = scmp.eq.s32.totalorder %s24, 0
      %p66 = por %p64, %p65
      %p67 = scmp.ne.s32.totalorder %s55, %s56
      %p68 = scmp.eq.s32.totalorder %s25, 1
      %p69 = por %p67, %p68
      %p71 = scmp.ne.s32.totalorder %s56, %s70
      %p72 = scmp.eq.s32.totalorder %s25, 0
      %p73 = por %p71, %p72
      %s75 = sadd.s32 %s74, 1
      %p78 = scmp.eq.s32.totalorder %s19, 1
      %p79 = scmp.ne.s32.totalorder %s74, %s76
      %p80 = scmp.eq.s32.totalorder %s19, 0
      %p81 = por %p79, %p80
      %p82 = scmp.ne.s32.totalorder %s74, %s76
      %p83 = scmp.eq.s32.totalorder %s24, 1
      %p84 = por %p82, %p83
      %p85 = scmp.ne.s32.totalorder %s76, %s77
      %p86 = scmp.eq.s32.totalorder %s24, 0
      %p87 = por %p85, %p86
      %p88 = scmp.ne.s32.totalorder %s76, %s77
      %p89 = scmp.eq.s32.totalorder %s25, 1
      %p90 = por %p88, %p89
      %p92 = scmp.ne.s32.totalorder %s77, %s91
      %p93 = scmp.eq.s32.totalorder %s25, 0
      %p94 = por %p92, %p93
      %s96 = sadd.s32 %s95, 1
      %p99 = scmp.eq.s32.totalorder %s19, 1
      %p100 = scmp.ne.s32.totalorder %s95, %s97
      %p101 = scmp.eq.s32.totalorder %s19, 0
      %p102 = por %p100, %p101
      %p103 = scmp.ne.s32.totalorder %s95, %s97
      %p104 = scmp.eq.s32.totalorder %s24, 1
      %p105 = por %p103, %p104
      %p106 = scmp.ne.s32.totalorder %s97, %s98
      %p107 = scmp.eq.s32.totalorder %s24, 0
      %p108 = por %p106, %p107
      %p109 = scmp.ne.s32.totalorder %s97, %s98
      %p110 = scmp.eq.s32.totalorder %s25, 1
      %p111 = por %p109, %p110
      %p113 = scmp.ne.s32.totalorder %s98, %s112
      %p114 = scmp.eq.s32.totalorder %s25, 0
      %p115 = por %p113, %p114
      %s117 = sadd.s32 %s116, 1
      %p120 = scmp.eq.s32.totalorder %s19, 1
      %p121 = scmp.ne.s32.totalorder %s116, %s118
      %p122 = scmp.eq.s32.totalorder %s19, 0
      %p123 = por %p121, %p122
      %p124 = scmp.ne.s32.totalorder %s116, %s118
      %p125 = scmp.eq.s32.totalorder %s24, 1
      %p126 = por %p124, %p125
      %p127 = scmp.ne.s32.totalorder %s118, %s119
      %p128 = scmp.eq.s32.totalorder %s24, 0
      %p129 = por %p127, %p128
      %p130 = scmp.ne.s32.totalorder %s118, %s119
      %p131 = scmp.eq.s32.totalorder %s25, 1
      %p132 = por %p130, %p131
      %p134 = scmp.ne.s32.totalorder %s119, %s133
      %p135 = scmp.eq.s32.totalorder %s25, 0
      %p136 = por %p134, %p135
      %s138 = sadd.s32 %s137, 1
      %p141 = scmp.eq.s32.totalorder %s19, 1
      %p142 = scmp.ne.s32.totalorder %s137, %s139
      %p143 = scmp.eq.s32.totalorder %s19, 0
      %p144 = por %p142, %p143
      %p145 = scmp.ne.s32.totalorder %s137, %s139
      %p146 = scmp.eq.s32.totalorder %s24, 1
      %p147 = por %p145, %p146
      %p148 = scmp.ne.s32.totalorder %s139, %s140
      %p149 = scmp.eq.s32.totalorder %s24, 0
      %p150 = por %p148, %p149
      %p151 = scmp.ne.s32.totalorder %s139, %s140
      %p152 = scmp.eq.s32.totalorder %s25, 1
      %p153 = por %p151, %p152
      %p155 = scmp.ne.s32.totalorder %s140, %s154
      %p156 = scmp.eq.s32.totalorder %s25, 0
      %p157 = por %p155, %p156
      %s159 = sadd.s32 %s158, 1
      %p162 = scmp.eq.s32.totalorder %s19, 1
      %p163 = scmp.ne.s32.totalorder %s158, %s160
      %p164 = scmp.eq.s32.totalorder %s19, 0
      %p165 = por %p163, %p164
      %p166 = scmp.ne.s32.totalorder %s158, %s160
      %p167 = scmp.eq.s32.totalorder %s24, 1
      %p168 = por %p166, %p167
      %p169 = scmp.ne.s32.totalorder %s160, %s161
      %p170 = scmp.eq.s32.totalorder %s24, 0
      %p171 = por %p169, %p170
      %p172 = scmp.ne.s32.totalorder %s160, %s161
      %p173 = scmp.eq.s32.totalorder %s25, 1
      %p174 = por %p172, %p173
      %p176 = scmp.ne.s32.totalorder %s161, %s175
      %p177 = scmp.eq.s32.totalorder %s25, 0
      %p178 = por %p176, %p177
      %s180 = sadd.s32 %s179, 1
      %p183 = scmp.eq.s32.totalorder %s19, 1
      %p184 = scmp.ne.s32.totalorder %s179, %s181
      %p185 = scmp.eq.s32.totalorder %s19, 0
      %p186 = por %p184, %p185
      %p187 = scmp.ne.s32.totalorder %s179, %s181
      %p188 = scmp.eq.s32.totalorder %s24, 1
      %p189 = por %p187, %p188
      %p190 = scmp.ne.s32.totalorder %s181, %s182
      %p191 = scmp.eq.s32.totalorder %s24, 0
      %p192 = por %p190, %p191
      %p193 = scmp.ne.s32.totalorder %s181, %s182
      %p194 = scmp.eq.s32.totalorder %s25, 1
      %p195 = por %p193, %p194
      %p197 = scmp.ne.s32.totalorder %s182, %s196
      %p198 = scmp.eq.s32.totalorder %s25, 0
      %p199 = por %p197, %p198
      %s201 = sadd.s32 %s200, 1
      %p204 = scmp.eq.s32.totalorder %s19, 1
      %p205 = scmp.ne.s32.totalorder %s200, %s202
      %p206 = scmp.eq.s32.totalorder %s19, 0
      %p207 = por %p205, %p206
      %p208 = scmp.ne.s32.totalorder %s200, %s202
      %p209 = scmp.eq.s32.totalorder %s24, 1
      %p210 = por %p208, %p209
      %p211 = scmp.ne.s32.totalorder %s202, %s203
      %p212 = scmp.eq.s32.totalorder %s24, 0
      %p213 = por %p211, %p212
      %p214 = scmp.ne.s32.totalorder %s202, %s203
      %p215 = scmp.eq.s32.totalorder %s25, 1
      %p216 = por %p214, %p215
      %p218 = scmp.ne.s32.totalorder %s203, %s217
      %p219 = scmp.eq.s32.totalorder %s25, 0
      %p220 = por %p218, %p219
      %s222 = sadd.s32 %s221, 1
      %p225 = scmp.eq.s32.totalorder %s19, 1
      %p226 = scmp.ne.s32.totalorder %s221, %s223
      %p227 = scmp.eq.s32.totalorder %s19, 0
      %p228 = por %p226, %p227
      %p229 = scmp.ne.s32.totalorder %s221, %s223
      %p230 = scmp.eq.s32.totalorder %s24, 1
      %p231 = por %p229, %p230
      %p232 = scmp.ne.s32.totalorder %s223, %s224
      %p233 = scmp.eq.s32.totalorder %s24, 0
      %p234 = por %p232, %p233
      %p235 = scmp.ne.s32.totalorder %s223, %s224
      %p236 = scmp.eq.s32.totalorder %s25, 1
      %p237 = por %p235, %p236
      %p239 = scmp.ne.s32.totalorder %s224, %s238
      %p240 = scmp.eq.s32.totalorder %s25, 0
      %p241 = por %p239, %p240
      %s243 = sadd.s32 %s242, 1
      %p246 = scmp.eq.s32.totalorder %s19, 1
      %p247 = scmp.ne.s32.totalorder %s242, %s244
      %p248 = scmp.eq.s32.totalorder %s19, 0
      %p249 = por %p247, %p248
      %p250 = scmp.ne.s32.totalorder %s242, %s244
      %p251 = scmp.eq.s32.totalorder %s24, 1
      %p252 = por %p250, %p251
      %p253 = scmp.ne.s32.totalorder %s244, %s245
      %p254 = scmp.eq.s32.totalorder %s24, 0
      %p255 = por %p253, %p254
      %p256 = scmp.ne.s32.totalorder %s244, %s245
      %p257 = scmp.eq.s32.totalorder %s25, 1
      %p258 = por %p256, %p257
      %p260 = scmp.ne.s32.totalorder %s245, %s259
      %p261 = scmp.eq.s32.totalorder %s25, 0
      %p262 = por %p260, %p261
      %s263 = ssub.s32 %s19, %s26
      %p264 = scmp.eq.s32.totalorder %s263, 0
      %s266 = sadd.s32 %s265, 1
      %s267 = scalar_select %p264, %s265, %s266
      %p270 = pneg %p264
      %p271 = scmp.eq.s32.totalorder %s19, 1
      %p272 = por %p270, %p271
      %p273 = scmp.ne.s32.totalorder %s265, %s268
      %p274 = scmp.eq.s32.totalorder %s19, 0
      %p275 = por %p273, %p274
      %p276 = scmp.ne.s32.totalorder %s265, %s268
      %p277 = scmp.eq.s32.totalorder %s24, 1
      %p278 = por %p276, %p277
      %p279 = scmp.ne.s32.totalorder %s268, %s269
      %p280 = scmp.eq.s32.totalorder %s24, 0
      %p281 = por %p279, %p280
      %p282 = scmp.ne.s32.totalorder %s268, %s269
      %p283 = scmp.eq.s32.totalorder %s25, 1
      %p284 = por %p282, %p283
      %p286 = scmp.ne.s32.totalorder %s269, %s285
      %p287 = scmp.eq.s32.totalorder %s25, 0
      %p288 = por %p286, %p287
      %p289 = scmp.le.s32.totalorder 1, %s19
      %p290 = scmp.lt.s32.totalorder %s19, 3
      %p291 = pnand %p289, %p290
      %p292 = pneg %p291
      // Predicated region
      $region9: #{_lambda_.1} parent=5 // pred_check
        _
      $region10: #{_lambda_.1} parent=5 // pred_check_branch
        %294 = sbr.rel (%p291) target = $region12
      $region11: #{_lambda_.1} parent=5 // pred_region
        %s295 = ssub.s32 %s19, 1
        // Predicated region
        $region13: #{_lambda_.1} parent=11 // pred_check
          %p296 = pneg %p66
        $region14: #{_lambda_.1} parent=11 // pred_check_branch
          %298 = sbr.rel (%p296) target = $region16
        $region15: #{_lambda_.1} parent=11 // pred_region
          _
        $region16: #{_lambda_.1} parent=11 // pred_fallthru
          _
        // Predicated region
        $region17: #{_lambda_.1} parent=11 // pred_check
          %p299 = pneg %p87
        $region18: #{_lambda_.1} parent=11 // pred_check_branch
          %301 = sbr.rel (%p299) target = $region20
        $region19: #{_lambda_.1} parent=11 // pred_region
          _
        $region20: #{_lambda_.1} parent=11 // pred_fallthru
          _
        // Predicated region
        $region21: #{_lambda_.1} parent=11 // pred_check
          %p302 = pneg %p108
        $region22: #{_lambda_.1} parent=11 // pred_check_branch
          %304 = sbr.rel (%p302) target = $region24
        $region23: #{_lambda_.1} parent=11 // pred_region
          _
        $region24: #{_lambda_.1} parent=11 // pred_fallthru
          _
        // Predicated region
        $region25: #{_lambda_.1} parent=11 // pred_check
          %p305 = pneg %p129
        $region26: #{_lambda_.1} parent=11 // pred_check_branch
          %307 = sbr.rel (%p305) target = $region28
        $region27: #{_lambda_.1} parent=11 // pred_region
          _
        $region28: #{_lambda_.1} parent=11 // pred_fallthru
          _
        // Predicated region
        $region29: #{_lambda_.1} parent=11 // pred_check
          %p308 = pneg %p150
        $region30: #{_lambda_.1} parent=11 // pred_check_branch
          %310 = sbr.rel (%p308) target = $region32
        $region31: #{_lambda_.1} parent=11 // pred_region
          %s312 = ssub.s32 3072, 3072
          %313 = vsyncadd [#allocation6], %s312
          %s314 = sshll.u32 [#allocation5], 4
          %s315 = int_to_ptr.vmem [resolvable:$true] %s314
          %320 = dma.hbm_to_vmem [thread:$0]  %s5, 3072, %s315, [#allocation6], 192, 192, 12
        $region32: #{_lambda_.1} parent=11 // pred_fallthru
          _
        // Predicated region
        $region33: #{_lambda_.1} parent=11 // pred_check
          %p321 = pneg %p171
        $region34: #{_lambda_.1} parent=11 // pred_check_branch
          %323 = sbr.rel (%p321) target = $region36
        $region35: #{_lambda_.1} parent=11 // pred_region
          %s325 = ssub.s32 3072, 3072
          %326 = vsyncadd [#allocation8], %s325
          %s327 = sshll.u32 [#allocation7], 4
          %s328 = int_to_ptr.vmem [resolvable:$true] %s327
          %333 = dma.hbm_to_vmem [thread:$0]  %s6, 3072, %s328, [#allocation8], 192, 192, 12
        $region36: #{_lambda_.1} parent=11 // pred_fallthru
          _
        // Predicated region
        $region37: #{_lambda_.1} parent=11 // pred_check
          %p334 = pneg %p192
        $region38: #{_lambda_.1} parent=11 // pred_check_branch
          %336 = sbr.rel (%p334) target = $region40
        $region39: #{_lambda_.1} parent=11 // pred_region
          _
        $region40: #{_lambda_.1} parent=11 // pred_fallthru
          _
        // Predicated region
        $region41: #{_lambda_.1} parent=11 // pred_check
          %p337 = pneg %p213
        $region42: #{_lambda_.1} parent=11 // pred_check_branch
          %339 = sbr.rel (%p337) target = $region44
        $region43: #{_lambda_.1} parent=11 // pred_region
          _
        $region44: #{_lambda_.1} parent=11 // pred_fallthru
          _
        // Predicated region
        $region45: #{_lambda_.1} parent=11 // pred_check
          %p340 = pneg %p234
        $region46: #{_lambda_.1} parent=11 // pred_check_branch
          %342 = sbr.rel (%p340) target = $region48
        $region47: #{_lambda_.1} parent=11 // pred_region
          %s344 = ssub.s32 1024, 1024
          %345 = vsyncadd [#allocation8], %s344
          %s346 = sshll.u32 [#allocation9], 4
          %s347 = int_to_ptr.vmem [resolvable:$true] %s346
          %352 = dma.hbm_to_vmem [thread:$0]  %s9, 1024, %s347, [#allocation8], 64, 64, 4
        $region48: #{_lambda_.1} parent=11 // pred_fallthru
          _
        // Predicated region
        $region49: #{_lambda_.1} parent=11 // pred_check
          %p353 = pneg %p255
        $region50: #{_lambda_.1} parent=11 // pred_check_branch
          %355 = sbr.rel (%p353) target = $region52
        $region51: #{_lambda_.1} parent=11 // pred_region
          _
        $region52: #{_lambda_.1} parent=11 // pred_fallthru
          _
      $region12: #{_lambda_.1} parent=5 // pred_fallthru
        _
      %p356 = scmp.lt.s32.totalorder %s19, 2
      // Predicated region
      $region53: #{_lambda_.1} parent=5 // pred_check
        %p357 = pneg %p356
      $region54: #{_lambda_.1} parent=5 // pred_check_branch
        %359 = sbr.rel (%p357) target = $region56
      $region55: #{_lambda_.1} parent=5 // pred_region
        // Predicated region
        $region57: #{_lambda_.1} parent=55 // pred_check
          %p360 = pneg %p39
        $region58: #{_lambda_.1} parent=55 // pred_check_branch
          %362 = sbr.rel (%p360) target = $region60
        $region59: #{_lambda_.1} parent=55 // pred_region
          %s363 = smul.u32 4, %s19
          %p364 = scmp.lt.s32.totalorder %s363, 7
          %s365 = scalar_select %p364, %s363, 7
          %s366 = smul.addr %s365, 4
          %s367 = scalar_lea.vmem %s0, %s366
          %s368 = smul.u32 4, %s19
        $region60: #{_lambda_.1} parent=55 // pred_fallthru
          _
      $region56: #{_lambda_.1} parent=5 // pred_fallthru
        _
      %p369 = scmp.le.s32.totalorder 1, %s19
      %p370 = scmp.lt.s32.totalorder %s19, 3
      %p371 = pnand %p369, %p370
      %p372 = pneg %p371
      // Predicated region
      $region61: #{_lambda_.1} parent=5 // pred_check
        _
      $region62: #{_lambda_.1} parent=5 // pred_check_branch
        %374 = sbr.rel (%p371) target = $region64
      $region63: #{_lambda_.1} parent=5 // pred_region
        %s375 = ssub.s32 %s19, 1
        // Predicated region
        $region65: #{_lambda_.1} parent=63 // pred_check
          %p376 = pneg %p150
        $region66: #{_lambda_.1} parent=63 // pred_check_branch
          %378 = sbr.rel (%p376) target = $region68
        $region67: #{_lambda_.1} parent=63 // pred_region
          %379 = dma.done [#allocation6], 3072
        $region68: #{_lambda_.1} parent=63 // pred_fallthru
          _
        // Predicated region
        $region69: #{_lambda_.1} parent=63 // pred_check
          %p380 = pneg %p171
        $region70: #{_lambda_.1} parent=63 // pred_check_branch
          %382 = sbr.rel (%p380) target = $region72
        $region71: #{_lambda_.1} parent=63 // pred_region
          %383 = dma.done [#allocation8], 3072
        $region72: #{_lambda_.1} parent=63 // pred_fallthru
          _
        // Predicated region
        $region73: #{_lambda_.1} parent=63 // pred_check
          %p384 = pneg %p234
        $region74: #{_lambda_.1} parent=63 // pred_check_branch
          %386 = sbr.rel (%p384) target = $region76
        $region75: #{_lambda_.1} parent=63 // pred_region
          %387 = dma.done [#allocation8], 1024
        $region76: #{_lambda_.1} parent=63 // pred_fallthru
          _
        %s388 = smul.u32 4, %s24
        %p389 = scmp.lt.s32.totalorder %s388, 7
        %s390 = scalar_select %p389, %s388, 7
        %s391 = smul.addr %s390, 4
        %s392 = scalar_lea.vmem %s0, %s391
        %p393 = pneg %p45
        %p394 = pneg %p42
        %p395 = pneg %p66
        %p396 = pneg %p63
        %p397 = pneg %p87
        %p398 = pneg %p84
        %p399 = pneg %p108
        %p400 = pneg %p105
        %p401 = pneg %p129
        %p402 = pneg %p126
        %p403 = pneg %p150
        %p404 = pneg %p147
        %p405 = pneg %p171
        %p406 = pneg %p168
        %p407 = pneg %p192
        %p408 = pneg %p189
        %p409 = pneg %p213
        %p410 = pneg %p210
        %p411 = pneg %p234
        %p412 = pneg %p231
        %p413 = pneg %p255
        %p414 = pneg %p252
        %p415 = pneg %p281
        %p416 = pneg %p278
        %s417 = smul.u32 4, %s24
        %p418 = scmp.lt.s32.totalorder %s417, 7
        %s419 = scalar_select %p418, %s417, 7
        %s420 = smul.addr %s419, 8
        %s421 = scalar_lea.vmem %s11, %s420
        %s422 = smul.u32 4, %s24
        %p423 = scmp.lt.s32.totalorder %s422, 7
        %s424 = scalar_select %p423, %s422, 7
        %s425 = smul.addr %s424, 4
        %s426 = scalar_lea.vmem %s0, %s425
        %s427 = smul.u32 4, %s24
        %s428 = smul.u32 4, %s24
        %p429 = scmp.lt.s32.totalorder %s428, 7
        %s430 = scalar_select %p429, %s428, 7
        %s431 = smul.addr %s430, 8
        %s432 = scalar_lea.vmem %s11, %s431
        %s433 = smul.u32 4, %s24
        %p435 = scmp.eq.s32.totalorder %s24, 0
        // Predicated region
        $region77: #{_lambda_.1} parent=63 // pred_check
          %p436 = pneg %p435
        $region78: #{_lambda_.1} parent=63 // pred_check_branch
          %438 = sbr.rel (%p436) target = $region80
        $region79: #{_lambda_.1} parent=63 // pred_region
          %439 = vst [vmem:[#allocation4] sm:$0xff] 0.0
          %440 = vst [vmem:[#allocation4 + $0x8] sm:$0xff] 0.0
        $region80: #{_lambda_.1} parent=63 // pred_fallthru
          _
        %v441 = vld [vmem:[%s426] sm:$0xf]
        %v442 = vld [vmem:[%s426 + $0x4] sm:$0xf]
        %v443 = vld [vmem:[%s426 + $0x8] sm:$0xf]
        %v444 = vld [vmem:[%s426 + $0xc] sm:$0xf]
        %v445 = vld [vmem:[%s1] sm:$0xff]
        %v446 = vld [vmem:[%s1 + $0x8] sm:$0xf]
        %v447 = vld [vmem:[%s1 + $0xc] sm:$0xff]
        %v448 = vld [vmem:[%s1 + $0x14] sm:$0xf]
        %v449 = vld [vmem:[%s1 + $0x18] sm:$0xff]
        %v450 = vld [vmem:[%s1 + $0x20] sm:$0xf]
        %v451 = vld [vmem:[%s1 + $0x24] sm:$0xff]
        %v452 = vld [vmem:[%s1 + $0x2c] sm:$0xf]
        %v453 = vld [vmem:[%s1 + $0x30] sm:$0xff]
        %v454 = vld [vmem:[%s1 + $0x38] sm:$0xf]
        %v455 = vld [vmem:[%s1 + $0x3c] sm:$0xff]
        %v456 = vld [vmem:[%s1 + $0x44] sm:$0xf]
        %v457 = vld [vmem:[%s1 + $0x48] sm:$0xff]
        %v458 = vld [vmem:[%s1 + $0x50] sm:$0xf]
        %v459 = vld [vmem:[%s1 + $0x54] sm:$0xff]
        %v460 = vld [vmem:[%s1 + $0x5c] sm:$0xf]
        %v461 = vld [vmem:[%s1 + $0x60] sm:$0xff]
        %v462 = vld [vmem:[%s1 + $0x68] sm:$0xf]
        %v463 = vld [vmem:[%s1 + $0x6c] sm:$0xff]
        %v464 = vld [vmem:[%s1 + $0x74] sm:$0xf]
        %v465 = vld [vmem:[%s1 + $0x78] sm:$0xff]
        %v466 = vld [vmem:[%s1 + $0x80] sm:$0xf]
        %v467 = vld [vmem:[%s1 + $0x84] sm:$0xff]
        %v468 = vld [vmem:[%s1 + $0x8c] sm:$0xf]
        %v469 = vld [vmem:[%s1 + $0x90] sm:$0xff]
        %v470 = vld [vmem:[%s1 + $0x98] sm:$0xf]
        %v471 = vld [vmem:[%s1 + $0x9c] sm:$0xff]
        %v472 = vld [vmem:[%s1 + $0xa4] sm:$0xf]
        %v473 = vld [vmem:[%s1 + $0xa8] sm:$0xff]
        %v474 = vld [vmem:[%s1 + $0xb0] sm:$0xf]
        %v475 = vld [vmem:[%s1 + $0xb4] sm:$0xff]
        %v476 = vld [vmem:[%s1 + $0xbc] sm:$0xf]
        %v477 = vld [vmem:[%s3] sm:$0x7]
        %v479 = vlaneseq
        %v480 = vshrl.u32 %v479, 7
        %v481 = vsub.s32 0, %v480
        %v482 = vrot.slane %v477, %v481
        %v483 = vlaneseq
        %v484 = vshrl.u32 %v483, 7
        %v485 = vsub.s32 1, %v484
        %v486 = vrot.slane %v477, %v485
        %v487 = vlaneseq
        %v488 = vshrl.u32 %v487, 7
        %v489 = vsub.s32 2, %v488
        %v490 = vrot.slane %v477, %v489
        %v498 = vunpack.c.l.b16 %v441
        %v499 = vunpack.c.l.b16 %v442
        %v500 = vunpack.c.l.b16 %v443
        %v501 = vunpack.c.l.b16 %v444
        %v502 = vpack.c.b16 %v499, %v498
        %v503 = vpack.c.b16 %v501, %v500
        %v538 = vunpack.c.l.b16 %v445
        %v539 = vunpack.c.h.b16 %v445
        %v540 = vunpack.c.l.b16 %v446
        %v541 = vunpack.c.l.b16 %v447
        %v542 = vunpack.c.h.b16 %v447
        %v543 = vunpack.c.l.b16 %v448
        %v544 = vunpack.c.l.b16 %v449
        %v545 = vunpack.c.h.b16 %v449
        %v546 = vunpack.c.l.b16 %v450
        %v547 = vunpack.c.l.b16 %v451
        %v548 = vunpack.c.h.b16 %v451
        %v549 = vunpack.c.l.b16 %v452
        %v550 = vunpack.c.l.b16 %v453
        %v551 = vunpack.c.h.b16 %v453
        %v552 = vunpack.c.l.b16 %v454
        %v553 = vunpack.c.l.b16 %v455
        %v554 = vunpack.c.h.b16 %v455
        %v555 = vunpack.c.l.b16 %v456
        %v556 = vunpack.c.l.b16 %v457
        %v557 = vunpack.c.h.b16 %v457
        %v558 = vunpack.c.l.b16 %v458
        %v559 = vunpack.c.l.b16 %v459
        %v560 = vunpack.c.h.b16 %v459
        %v561 = vunpack.c.l.b16 %v460
        %v562 = vunpack.c.l.b16 %v461
        %v563 = vunpack.c.h.b16 %v461
        %v564 = vunpack.c.l.b16 %v462
        %v565 = vunpack.c.l.b16 %v463
        %v566 = vunpack.c.h.b16 %v463
        %v567 = vunpack.c.l.b16 %v464
        %v568 = vunpack.c.l.b16 %v465
        %v569 = vunpack.c.h.b16 %v465
        %v570 = vunpack.c.l.b16 %v466
        %v571 = vunpack.c.l.b16 %v467
        %v572 = vunpack.c.h.b16 %v467
        %v573 = vunpack.c.l.b16 %v468
        %v574 = vunpack.c.l.b16 %v469
        %v575 = vunpack.c.h.b16 %v469
        %v576 = vunpack.c.l.b16 %v470
        %v577 = vunpack.c.l.b16 %v471
        %v578 = vunpack.c.h.b16 %v471
        %v579 = vunpack.c.l.b16 %v472
        %v580 = vunpack.c.l.b16 %v473
        %v581 = vunpack.c.h.b16 %v473
        %v582 = vunpack.c.l.b16 %v474
        %v583 = vunpack.c.l.b16 %v475
        %v584 = vunpack.c.h.b16 %v475
        %v585 = vunpack.c.l.b16 %v476
        %v586 = vpack.c.b16 %v541, %v538
        %v587 = vpack.c.b16 %v542, %v539
        %v588 = vpack.c.b16 %v543, %v540
        %v589 = vpack.c.b16 %v547, %v544
        %v590 = vpack.c.b16 %v548, %v545
        %v591 = vpack.c.b16 %v549, %v546
        %v592 = vpack.c.b16 %v553, %v550
        %v593 = vpack.c.b16 %v554, %v551
        %v594 = vpack.c.b16 %v555, %v552
        %v595 = vpack.c.b16 %v559, %v556
        %v596 = vpack.c.b16 %v560, %v557
        %v597 = vpack.c.b16 %v561, %v558
        %v598 = vpack.c.b16 %v565, %v562
        %v599 = vpack.c.b16 %v566, %v563
        %v600 = vpack.c.b16 %v567, %v564
        %v601 = vpack.c.b16 %v571, %v568
        %v602 = vpack.c.b16 %v572, %v569
        %v603 = vpack.c.b16 %v573, %v570
        %v604 = vpack.c.b16 %v577, %v574
        %v605 = vpack.c.b16 %v578, %v575
        %v606 = vpack.c.b16 %v579, %v576
        %v607 = vpack.c.b16 %v583, %v580
        %v608 = vpack.c.b16 %v584, %v581
        %v609 = vpack.c.b16 %v585, %v582
        %634 = vmatprep.subr.bf16.mxu0 %v608
        %635 = vmatpush1.bf16.msra.mxu0 %v607
        %636 = vmatprep.subr.bf16.mxu0 %v605
        %637 = vmatpush1.bf16.msra.mxu0 %v604
        %638 = vmatprep.subr.bf16.mxu0 %v602
        %639 = vmatpush1.bf16.msra.mxu0 %v601
        %640 = vmatprep.subr.bf16.mxu0 %v599
        %641 = vmatpush1.bf16.msra.mxu0 %v598
        %642 = vmatprep.subr.bf16.mxu0 %v596
        %643 = vmatpush1.bf16.msra.mxu0 %v595
        %644 = vmatprep.subr.bf16.mxu0 %v593
        %645 = vmatpush1.bf16.msra.mxu0 %v592
        %646 = vmatprep.subr.bf16.mxu0 %v590
        %647 = vmatpush1.bf16.msra.mxu0 %v589
        %648 = vmatprep.subr.bf16.mxu0 %v587
        %649 = vmatpush1.bf16.msra.mxu0 %v586
        %650 = vmatprep.subr.bf16.mxu0 0
        %651 = vmatpush2.bf16.msra.mxu0 0
        %652 = vmatprep.subr.bf16.mxu0 0
        %653 = vmatpush2.bf16.msra.mxu0 0
        %654 = vmatprep.subr.bf16.mxu0 0
        %655 = vmatpush2.bf16.msra.mxu0 0
        %656 = vmatprep.subr.bf16.mxu0 0
        %657 = vmatpush2.bf16.msra.mxu0 0
        %658 = vmatprep.subr.bf16.mxu0 0
        %659 = vmatpush2.bf16.msra.mxu0 0
        %660 = vmatprep.subr.bf16.mxu0 0
        %661 = vmatpush2.bf16.msra.mxu0 0
        %662 = vmatprep.subr.bf16.mxu0 0
        %663 = vmatpush2.bf16.msra.mxu0 0
        %664 = vmatprep.subr.bf16.mxu0 0
        %665 = vmatpush2.bf16.msra.mxu0 0
        %666 = vmatprep.mubr.bf16.mxu0 0
        %667 = vmatmul.mubr.bf16.gmra.mxu0 %v502
        %v668 = vpop.f32.mrf.mxu0
        %v669 = vadd.f32 %v482, %v668
        %v670 = vpop.f32.mrf.mxu0
        %v671 = vadd.f32 %v486, %v670
        %v672 = vpop.f32.mrf.mxu0
        %v673 = vadd.f32 %v482, %v672
        %v674 = vpop.f32.mrf.mxu0
        %v675 = vadd.f32 %v486, %v674
        %676 = vmatprep.mubr.bf16.mxu0 0
        %677 = vmatmul.mubr.bf16.gmra.mxu0 %v503
        %v678 = vpop.f32.mrf.mxu0
        %v679 = vadd.f32 %v482, %v678
        %v680 = vpop.f32.mrf.mxu0
        %v681 = vadd.f32 %v486, %v680
        %v682 = vpop.f32.mrf.mxu0
        %v683 = vadd.f32 %v482, %v682
        %v684 = vpop.f32.mrf.mxu0
        %v685 = vadd.f32 %v486, %v684
        %686 = vdwg.mxu0
        %687 = vmatprep.subr.bf16.mxu0 0
        %688 = vmatpush1.bf16.msra.mxu0 %v609
        %689 = vmatprep.subr.bf16.mxu0 0
        %690 = vmatpush1.bf16.msra.mxu0 %v606
        %691 = vmatprep.subr.bf16.mxu0 0
        %692 = vmatpush1.bf16.msra.mxu0 %v603
        %693 = vmatprep.subr.bf16.mxu0 0
        %694 = vmatpush1.bf16.msra.mxu0 %v600
        %695 = vmatprep.subr.bf16.mxu0 0
        %696 = vmatpush1.bf16.msra.mxu0 %v597
        %697 = vmatprep.subr.bf16.mxu0 0
        %698 = vmatpush1.bf16.msra.mxu0 %v594
        %699 = vmatprep.subr.bf16.mxu0 0
        %700 = vmatpush1.bf16.msra.mxu0 %v591
        %701 = vmatprep.subr.bf16.mxu0 0
        %702 = vmatpush1.bf16.msra.mxu0 %v588
        %703 = vmatprep.subr.bf16.mxu0 0
        %704 = vmatpush2.bf16.msra.mxu0 0
        %705 = vmatprep.subr.bf16.mxu0 0
        %706 = vmatpush2.bf16.msra.mxu0 0
        %707 = vmatprep.subr.bf16.mxu0 0
        %708 = vmatpush2.bf16.msra.mxu0 0
        %709 = vmatprep.subr.bf16.mxu0 0
        %710 = vmatpush2.bf16.msra.mxu0 0
        %711 = vmatprep.subr.bf16.mxu0 0
        %712 = vmatpush2.bf16.msra.mxu0 0
        %713 = vmatprep.subr.bf16.mxu0 0
        %714 = vmatpush2.bf16.msra.mxu0 0
        %715 = vmatprep.subr.bf16.mxu0 0
        %716 = vmatpush2.bf16.msra.mxu0 0
        %717 = vmatprep.subr.bf16.mxu0 0
        %718 = vmatpush2.bf16.msra.mxu0 0
        %719 = vmatprep.mubr.bf16.mxu0 0
        %720 = vmatmul.mubr.bf16.gmra.mxu0 %v502
        %v721 = vpop.f32.mrf.mxu0
        %v722 = vadd.f32 %v490, %v721
        %v723 = vpop.f32.mrf.mxu0
        %v724 = vpop.f32.mrf.mxu0
        %v725 = vadd.f32 %v490, %v724
        %v726 = vpop.f32.mrf.mxu0
        %727 = vmatprep.mubr.bf16.mxu0 0
        %728 = vmatmul.mubr.bf16.gmra.mxu0 %v503
        %v729 = vpop.f32.mrf.mxu0
        %v730 = vadd.f32 %v490, %v729
        %v731 = vpop.f32.mrf.mxu0
        %v732 = vpop.f32.mrf.mxu0
        %v733 = vadd.f32 %v490, %v732
        %v734 = vpop.f32.mrf.mxu0
        %735 = vdwg.mxu0
        %736 = vst [vmem:[#allocation2] sm:$0xff] %v669
        %737 = vst [vmem:[#allocation2 + $0x8] sm:$0xff] %v671
        %738 = vst [vmem:[#allocation2 + $0x10] sm:$0xff] %v722
        %739 = vst [vmem:[#allocation2 + $0x18] sm:$0xff] %v673
        %740 = vst [vmem:[#allocation2 + $0x20] sm:$0xff] %v675
        %741 = vst [vmem:[#allocation2 + $0x28] sm:$0xff] %v725
        %742 = vst [vmem:[#allocation2 + $0x30] sm:$0xff] %v679
        %743 = vst [vmem:[#allocation2 + $0x38] sm:$0xff] %v681
        %744 = vst [vmem:[#allocation2 + $0x40] sm:$0xff] %v730
        %745 = vst [vmem:[#allocation2 + $0x48] sm:$0xff] %v683
        %746 = vst [vmem:[#allocation2 + $0x50] sm:$0xff] %v685
        %747 = vst [vmem:[#allocation2 + $0x58] sm:$0xff] %v733
        %v748 = vld [vmem:[%s2] sm:$0xff]
        %v749 = vld [vmem:[%s2 + $0x8] sm:$0xf]
        %v750 = vld [vmem:[%s2 + $0xc] sm:$0xff]
        %v751 = vld [vmem:[%s2 + $0x14] sm:$0xf]
        %v752 = vld [vmem:[%s2 + $0x18] sm:$0xff]
        %v753 = vld [vmem:[%s2 + $0x20] sm:$0xf]
        %v754 = vld [vmem:[%s2 + $0x24] sm:$0xff]
        %v755 = vld [vmem:[%s2 + $0x2c] sm:$0xf]
        %v756 = vld [vmem:[%s2 + $0x30] sm:$0xff]
        %v757 = vld [vmem:[%s2 + $0x38] sm:$0xf]
        %v758 = vld [vmem:[%s2 + $0x3c] sm:$0xff]
        %v759 = vld [vmem:[%s2 + $0x44] sm:$0xf]
        %v760 = vld [vmem:[%s2 + $0x48] sm:$0xff]
        %v761 = vld [vmem:[%s2 + $0x50] sm:$0xf]
        %v762 = vld [vmem:[%s2 + $0x54] sm:$0xff]
        %v763 = vld [vmem:[%s2 + $0x5c] sm:$0xf]
        %v764 = vld [vmem:[%s2 + $0x60] sm:$0xff]
        %v765 = vld [vmem:[%s2 + $0x68] sm:$0xf]
        %v766 = vld [vmem:[%s2 + $0x6c] sm:$0xff]
        %v767 = vld [vmem:[%s2 + $0x74] sm:$0xf]
        %v768 = vld [vmem:[%s2 + $0x78] sm:$0xff]
        %v769 = vld [vmem:[%s2 + $0x80] sm:$0xf]
        %v770 = vld [vmem:[%s2 + $0x84] sm:$0xff]
        %v771 = vld [vmem:[%s2 + $0x8c] sm:$0xf]
        %v772 = vld [vmem:[%s2 + $0x90] sm:$0xff]
        %v773 = vld [vmem:[%s2 + $0x98] sm:$0xf]
        %v774 = vld [vmem:[%s2 + $0x9c] sm:$0xff]
        %v775 = vld [vmem:[%s2 + $0xa4] sm:$0xf]
        %v776 = vld [vmem:[%s2 + $0xa8] sm:$0xff]
        %v777 = vld [vmem:[%s2 + $0xb0] sm:$0xf]
        %v778 = vld [vmem:[%s2 + $0xb4] sm:$0xff]
        %v779 = vld [vmem:[%s2 + $0xbc] sm:$0xf]
        %v780 = vld [vmem:[%s4] sm:$0x1]
        %v782 = vlaneseq
        %v783 = vshrl.u32 %v782, 7
        %v784 = vsub.s32 0, %v783
        %v785 = vrot.slane %v780, %v784
        %v787 = vld [vmem:[#allocation4] sm:$0xff]
        %s788 = smul.u32 0, 3
        %s789 = smul.addr %s788, 8
        %s790 = scalar_lea.vmem [#allocation2], %s789
        %v791 = vld [vmem:[%s790] sm:$0xff]
        %v792 = vld [vmem:[%s790 + $0x8] sm:$0xff]
        %v793 = vld [vmem:[%s790 + $0x10] sm:$0xff]
        %v794 = vpack.c.bf16 %v787, %v787
        %v827 = vunpack.c.l.b16 %v748
        %v828 = vunpack.c.h.b16 %v748
        %v829 = vunpack.c.l.b16 %v749
        %v830 = vunpack.c.l.b16 %v750
        %v831 = vunpack.c.h.b16 %v750
        %v832 = vunpack.c.l.b16 %v751
        %v833 = vunpack.c.l.b16 %v752
        %v834 = vunpack.c.h.b16 %v752
        %v835 = vunpack.c.l.b16 %v753
        %v836 = vunpack.c.l.b16 %v754
        %v837 = vunpack.c.h.b16 %v754
        %v838 = vunpack.c.l.b16 %v755
        %v839 = vunpack.c.l.b16 %v756
        %v840 = vunpack.c.h.b16 %v756
        %v841 = vunpack.c.l.b16 %v757
        %v842 = vunpack.c.l.b16 %v758
        %v843 = vunpack.c.h.b16 %v758
        %v844 = vunpack.c.l.b16 %v759
        %v845 = vunpack.c.l.b16 %v760
        %v846 = vunpack.c.h.b16 %v760
        %v847 = vunpack.c.l.b16 %v761
        %v848 = vunpack.c.l.b16 %v762
        %v849 = vunpack.c.h.b16 %v762
        %v850 = vunpack.c.l.b16 %v763
        %v851 = vunpack.c.l.b16 %v764
        %v852 = vunpack.c.h.b16 %v764
        %v853 = vunpack.c.l.b16 %v765
        %v854 = vunpack.c.l.b16 %v766
        %v855 = vunpack.c.h.b16 %v766
        %v856 = vunpack.c.l.b16 %v767
        %v857 = vunpack.c.l.b16 %v768
        %v858 = vunpack.c.h.b16 %v768
        %v859 = vunpack.c.l.b16 %v769
        %v860 = vunpack.c.l.b16 %v770
        %v861 = vunpack.c.h.b16 %v770
        %v862 = vunpack.c.l.b16 %v771
        %v863 = vunpack.c.l.b16 %v772
        %v864 = vunpack.c.h.b16 %v772
        %v865 = vunpack.c.l.b16 %v773
        %v866 = vunpack.c.l.b16 %v774
        %v867 = vunpack.c.h.b16 %v774
        %v868 = vunpack.c.l.b16 %v775
        %v869 = vunpack.c.l.b16 %v776
        %v870 = vunpack.c.h.b16 %v776
        %v871 = vunpack.c.l.b16 %v777
        %v872 = vunpack.c.l.b16 %v778
        %v873 = vunpack.c.h.b16 %v778
        %v874 = vunpack.c.l.b16 %v779
        %v875 = vpack.c.b16 %v830, %v827
        %v876 = vpack.c.b16 %v831, %v828
        %v877 = vpack.c.b16 %v832, %v829
        %v878 = vpack.c.b16 %v836, %v833
        %v879 = vpack.c.b16 %v837, %v834
        %v880 = vpack.c.b16 %v838, %v835
        %v881 = vpack.c.b16 %v842, %v839
        %v882 = vpack.c.b16 %v843, %v840
        %v883 = vpack.c.b16 %v844, %v841
        %v884 = vpack.c.b16 %v848, %v845
        %v885 = vpack.c.b16 %v849, %v846
        %v886 = vpack.c.b16 %v850, %v847
        %v887 = vpack.c.b16 %v854, %v851
        %v888 = vpack.c.b16 %v855, %v852
        %v889 = vpack.c.b16 %v856, %v853
        %v890 = vpack.c.b16 %v860, %v857
        %v891 = vpack.c.b16 %v861, %v858
        %v892 = vpack.c.b16 %v862, %v859
        %v893 = vpack.c.b16 %v866, %v863
        %v894 = vpack.c.b16 %v867, %v864
        %v895 = vpack.c.b16 %v868, %v865
        %v896 = vpack.c.b16 %v872, %v869
        %v897 = vpack.c.b16 %v873, %v870
        %v898 = vpack.c.b16 %v874, %v871
        %923 = vmatprep.subr.bf16.mxu0 %v897
        %924 = vmatpush1.bf16.msra.mxu0 %v896
        %925 = vmatprep.subr.bf16.mxu0 %v894
        %926 = vmatpush1.bf16.msra.mxu0 %v893
        %927 = vmatprep.subr.bf16.mxu0 %v891
        %928 = vmatpush1.bf16.msra.mxu0 %v890
        %929 = vmatprep.subr.bf16.mxu0 %v888
        %930 = vmatpush1.bf16.msra.mxu0 %v887
        %931 = vmatprep.subr.bf16.mxu0 %v885
        %932 = vmatpush1.bf16.msra.mxu0 %v884
        %933 = vmatprep.subr.bf16.mxu0 %v882
        %934 = vmatpush1.bf16.msra.mxu0 %v881
        %935 = vmatprep.subr.bf16.mxu0 %v879
        %936 = vmatpush1.bf16.msra.mxu0 %v878
        %937 = vmatprep.subr.bf16.mxu0 %v876
        %938 = vmatpush1.bf16.msra.mxu0 %v875
        %939 = vmatprep.subr.bf16.mxu0 0
        %940 = vmatpush2.bf16.msra.mxu0 0
        %941 = vmatprep.subr.bf16.mxu0 0
        %942 = vmatpush2.bf16.msra.mxu0 0
        %943 = vmatprep.subr.bf16.mxu0 0
        %944 = vmatpush2.bf16.msra.mxu0 0
        %945 = vmatprep.subr.bf16.mxu0 0
        %946 = vmatpush2.bf16.msra.mxu0 0
        %947 = vmatprep.subr.bf16.mxu0 0
        %948 = vmatpush2.bf16.msra.mxu0 0
        %949 = vmatprep.subr.bf16.mxu0 0
        %950 = vmatpush2.bf16.msra.mxu0 0
        %951 = vmatprep.subr.bf16.mxu0 0
        %952 = vmatpush2.bf16.msra.mxu0 0
        %953 = vmatprep.subr.bf16.mxu0 0
        %954 = vmatpush2.bf16.msra.mxu0 0
        %955 = vmatprep.mubr.bf16.mxu0 0
        %956 = vmatmul.mubr.bf16.gmra.mxu0 %v794
        %v957 = vpop.f32.mrf.mxu0
        %v958 = vadd.f32 0.0, %v957
        %v959 = vpop.f32.mrf.mxu0
        %v960 = vadd.f32 0.0, %v959
        %v961 = vpop.f32.mrf.mxu0
        %v962 = vpop.f32.mrf.mxu0
        %963 = vdwg.mxu0
        %964 = vmatprep.subr.bf16.mxu0 0
        %965 = vmatpush1.bf16.msra.mxu0 %v898
        %966 = vmatprep.subr.bf16.mxu0 0
        %967 = vmatpush1.bf16.msra.mxu0 %v895
        %968 = vmatprep.subr.bf16.mxu0 0
        %969 = vmatpush1.bf16.msra.mxu0 %v892
        %970 = vmatprep.subr.bf16.mxu0 0
        %971 = vmatpush1.bf16.msra.mxu0 %v889
        %972 = vmatprep.subr.bf16.mxu0 0
        %973 = vmatpush1.bf16.msra.mxu0 %v886
        %974 = vmatprep.subr.bf16.mxu0 0
        %975 = vmatpush1.bf16.msra.mxu0 %v883
        %976 = vmatprep.subr.bf16.mxu0 0
        %977 = vmatpush1.bf16.msra.mxu0 %v880
        %978 = vmatprep.subr.bf16.mxu0 0
        %979 = vmatpush1.bf16.msra.mxu0 %v877
        %980 = vmatprep.subr.bf16.mxu0 0
        %981 = vmatpush2.bf16.msra.mxu0 0
        %982 = vmatprep.subr.bf16.mxu0 0
        %983 = vmatpush2.bf16.msra.mxu0 0
        %984 = vmatprep.subr.bf16.mxu0 0
        %985 = vmatpush2.bf16.msra.mxu0 0
        %986 = vmatprep.subr.bf16.mxu0 0
        %987 = vmatpush2.bf16.msra.mxu0 0
        %988 = vmatprep.subr.bf16.mxu0 0
        %989 = vmatpush2.bf16.msra.mxu0 0
        %990 = vmatprep.subr.bf16.mxu0 0
        %991 = vmatpush2.bf16.msra.mxu0 0
        %992 = vmatprep.subr.bf16.mxu0 0
        %993 = vmatpush2.bf16.msra.mxu0 0
        %994 = vmatprep.subr.bf16.mxu0 0
        %995 = vmatpush2.bf16.msra.mxu0 0
        %996 = vmatprep.mubr.bf16.mxu0 0
        %997 = vmatmul.mubr.bf16.gmra.mxu0 %v794
        %v998 = vpop.f32.mrf.mxu0
        %v999 = vadd.f32 0.0, %v998
        %v1000 = vpop.f32.mrf.mxu0
        %v1001 = vpop.f32.mrf.mxu0
        %v1002 = vpop.f32.mrf.mxu0
        %1003 = vdwg.mxu0
        %v1004 = vadd.f32 %v791, %v958
        %v1005 = vxor.u32 %v1004, 2147483648
        %v1006 = vmul.f32 %v1005, 1.442695
        %v1007 = vpow.pop %v1006
        %v1008 = vadd.f32 %v1007, 1.0
        %v1009 = vrcp.pop %v1008
        %v1010 = vmul.f32 1.0, %v1009
        %v1011 = vadd.f32 %v792, %v960
        %v1012 = vxor.u32 %v1011, 2147483648
        %v1013 = vmul.f32 %v1012, 1.442695
        %v1014 = vpow.pop %v1013
        %v1015 = vadd.f32 %v1014, 1.0
        %v1016 = vrcp.pop %v1015
        %v1017 = vmul.f32 1.0, %v1016
        %v1018 = vadd.f32 %v999, %v785
        %v1019 = vmul.f32 %v1010, %v1018
        %v1020 = vadd.f32 %v793, %v1019
        %v1021 = vtanh.pop %v1020
        %v1022 = vsub.f32 1.0, %v1017
        %v1023 = vmul.f32 %v1022, %v1021
        %v1024 = vmul.f32 %v1017, %v787
        %v1025 = vadd.f32 %v1023, %v1024
        %1026 = vst [vmem:[#allocation3] sm:$0xff] %v1025
        %s1027 = smul.u32 1, 3
        %s1028 = smul.addr %s1027, 8
        %s1029 = scalar_lea.vmem [#allocation2], %s1028
        %v1030 = vld [vmem:[%s1029] sm:$0xff]
        %v1031 = vld [vmem:[%s1029 + $0x8] sm:$0xff]
        %v1032 = vld [vmem:[%s1029 + $0x10] sm:$0xff]
        %v1033 = vpack.c.bf16 %v1025, %v1025
        %1034 = vmatprep.subr.bf16.mxu0 %v897
        %1035 = vmatpush1.bf16.msra.mxu0 %v896
        %1036 = vmatprep.subr.bf16.mxu0 %v894
        %1037 = vmatpush1.bf16.msra.mxu0 %v893
        %1038 = vmatprep.subr.bf16.mxu0 %v891
        %1039 = vmatpush1.bf16.msra.mxu0 %v890
        %1040 = vmatprep.subr.bf16.mxu0 %v888
        %1041 = vmatpush1.bf16.msra.mxu0 %v887
        %1042 = vmatprep.subr.bf16.mxu0 %v885
        %1043 = vmatpush1.bf16.msra.mxu0 %v884
        %1044 = vmatprep.subr.bf16.mxu0 %v882
        %1045 = vmatpush1.bf16.msra.mxu0 %v881
        %1046 = vmatprep.subr.bf16.mxu0 %v879
        %1047 = vmatpush1.bf16.msra.mxu0 %v878
        %1048 = vmatprep.subr.bf16.mxu0 %v876
        %1049 = vmatpush1.bf16.msra.mxu0 %v875
        %1050 = vmatprep.subr.bf16.mxu0 0
        %1051 = vmatpush2.bf16.msra.mxu0 0
        %1052 = vmatprep.subr.bf16.mxu0 0
        %1053 = vmatpush2.bf16.msra.mxu0 0
        %1054 = vmatprep.subr.bf16.mxu0 0
        %1055 = vmatpush2.bf16.msra.mxu0 0
        %1056 = vmatprep.subr.bf16.mxu0 0
        %1057 = vmatpush2.bf16.msra.mxu0 0
        %1058 = vmatprep.subr.bf16.mxu0 0
        %1059 = vmatpush2.bf16.msra.mxu0 0
        %1060 = vmatprep.subr.bf16.mxu0 0
        %1061 = vmatpush2.bf16.msra.mxu0 0
        %1062 = vmatprep.subr.bf16.mxu0 0
        %1063 = vmatpush2.bf16.msra.mxu0 0
        %1064 = vmatprep.subr.bf16.mxu0 0
        %1065 = vmatpush2.bf16.msra.mxu0 0
        %1066 = vmatprep.mubr.bf16.mxu0 0
        %1067 = vmatmul.mubr.bf16.gmra.mxu0 %v1033
        %v1068 = vpop.f32.mrf.mxu0
        %v1069 = vadd.f32 0.0, %v1068
        %v1070 = vpop.f32.mrf.mxu0
        %v1071 = vadd.f32 0.0, %v1070
        %v1072 = vpop.f32.mrf.mxu0
        %v1073 = vpop.f32.mrf.mxu0
        %1074 = vdwg.mxu0
        %1075 = vmatprep.subr.bf16.mxu0 0
        %1076 = vmatpush1.bf16.msra.mxu0 %v898
        %1077 = vmatprep.subr.bf16.mxu0 0
        %1078 = vmatpush1.bf16.msra.mxu0 %v895
        %1079 = vmatprep.subr.bf16.mxu0 0
        %1080 = vmatpush1.bf16.msra.mxu0 %v892
        %1081 = vmatprep.subr.bf16.mxu0 0
        %1082 = vmatpush1.bf16.msra.mxu0 %v889
        %1083 = vmatprep.subr.bf16.mxu0 0
        %1084 = vmatpush1.bf16.msra.mxu0 %v886
        %1085 = vmatprep.subr.bf16.mxu0 0
        %1086 = vmatpush1.bf16.msra.mxu0 %v883
        %1087 = vmatprep.subr.bf16.mxu0 0
        %1088 = vmatpush1.bf16.msra.mxu0 %v880
        %1089 = vmatprep.subr.bf16.mxu0 0
        %1090 = vmatpush1.bf16.msra.mxu0 %v877
        %1091 = vmatprep.subr.bf16.mxu0 0
        %1092 = vmatpush2.bf16.msra.mxu0 0
        %1093 = vmatprep.subr.bf16.mxu0 0
        %1094 = vmatpush2.bf16.msra.mxu0 0
        %1095 = vmatprep.subr.bf16.mxu0 0
        %1096 = vmatpush2.bf16.msra.mxu0 0
        %1097 = vmatprep.subr.bf16.mxu0 0
        %1098 = vmatpush2.bf16.msra.mxu0 0
        %1099 = vmatprep.subr.bf16.mxu0 0
        %1100 = vmatpush2.bf16.msra.mxu0 0
        %1101 = vmatprep.subr.bf16.mxu0 0
        %1102 = vmatpush2.bf16.msra.mxu0 0
        %1103 = vmatprep.subr.bf16.mxu0 0
        %1104 = vmatpush2.bf16.msra.mxu0 0
        %1105 = vmatprep.subr.bf16.mxu0 0
        %1106 = vmatpush2.bf16.msra.mxu0 0
        %1107 = vmatprep.mubr.bf16.mxu0 0
        %1108 = vmatmul.mubr.bf16.gmra.mxu0 %v1033
        %v1109 = vpop.f32.mrf.mxu0
        %v1110 = vadd.f32 0.0, %v1109
        %v1111 = vpop.f32.mrf.mxu0
        %v1112 = vpop.f32.mrf.mxu0
        %v1113 = vpop.f32.mrf.mxu0
        %1114 = vdwg.mxu0
        %v1115 = vadd.f32 %v1030, %v1069
        %v1116 = vxor.u32 %v1115, 2147483648
        %v1117 = vmul.f32 %v1116, 1.442695
        %v1118 = vpow.pop %v1117
        %v1119 = vadd.f32 %v1118, 1.0
        %v1120 = vrcp.pop %v1119
        %v1121 = vmul.f32 1.0, %v1120
        %v1122 = vadd.f32 %v1031, %v1071
        %v1123 = vxor.u32 %v1122, 2147483648
        %v1124 = vmul.f32 %v1123, 1.442695
        %v1125 = vpow.pop %v1124
        %v1126 = vadd.f32 %v1125, 1.0
        %v1127 = vrcp.pop %v1126
        %v1128 = vmul.f32 1.0, %v1127
        %v1129 = vadd.f32 %v1110, %v785
        %v1130 = vmul.f32 %v1121, %v1129
        %v1131 = vadd.f32 %v1032, %v1130
        %v1132 = vtanh.pop %v1131
        %v1133 = vsub.f32 1.0, %v1128
        %v1134 = vmul.f32 %v1133, %v1132
        %v1135 = vmul.f32 %v1128, %v1025
        %v1136 = vadd.f32 %v1134, %v1135
        %s1137 = scalar_lea.vmem [#allocation3], 8
        %1138 = vst [vmem:[%s1137] sm:$0xff] %v1136
        %s1139 = smul.u32 2, 3
        %s1140 = smul.addr %s1139, 8
        %s1141 = scalar_lea.vmem [#allocation2], %s1140
        %v1142 = vld [vmem:[%s1141] sm:$0xff]
        %v1143 = vld [vmem:[%s1141 + $0x8] sm:$0xff]
        %v1144 = vld [vmem:[%s1141 + $0x10] sm:$0xff]
        %v1145 = vpack.c.bf16 %v1136, %v1136
        %1146 = vmatprep.subr.bf16.mxu0 %v897
        %1147 = vmatpush1.bf16.msra.mxu0 %v896
        %1148 = vmatprep.subr.bf16.mxu0 %v894
        %1149 = vmatpush1.bf16.msra.mxu0 %v893
        %1150 = vmatprep.subr.bf16.mxu0 %v891
        %1151 = vmatpush1.bf16.msra.mxu0 %v890
        %1152 = vmatprep.subr.bf16.mxu0 %v888
        %1153 = vmatpush1.bf16.msra.mxu0 %v887
        %1154 = vmatprep.subr.bf16.mxu0 %v885
        %1155 = vmatpush1.bf16.msra.mxu0 %v884
        %1156 = vmatprep.subr.bf16.mxu0 %v882
        %1157 = vmatpush1.bf16.msra.mxu0 %v881
        %1158 = vmatprep.subr.bf16.mxu0 %v879
        %1159 = vmatpush1.bf16.msra.mxu0 %v878
        %1160 = vmatprep.subr.bf16.mxu0 %v876
        %1161 = vmatpush1.bf16.msra.mxu0 %v875
        %1162 = vmatprep.subr.bf16.mxu0 0
        %1163 = vmatpush2.bf16.msra.mxu0 0
        %1164 = vmatprep.subr.bf16.mxu0 0
        %1165 = vmatpush2.bf16.msra.mxu0 0
        %1166 = vmatprep.subr.bf16.mxu0 0
        %1167 = vmatpush2.bf16.msra.mxu0 0
        %1168 = vmatprep.subr.bf16.mxu0 0
        %1169 = vmatpush2.bf16.msra.mxu0 0
        %1170 = vmatprep.subr.bf16.mxu0 0
        %1171 = vmatpush2.bf16.msra.mxu0 0
        %1172 = vmatprep.subr.bf16.mxu0 0
        %1173 = vmatpush2.bf16.msra.mxu0 0
        %1174 = vmatprep.subr.bf16.mxu0 0
        %1175 = vmatpush2.bf16.msra.mxu0 0
        %1176 = vmatprep.subr.bf16.mxu0 0
        %1177 = vmatpush2.bf16.msra.mxu0 0
        %1178 = vmatprep.mubr.bf16.mxu0 0
        %1179 = vmatmul.mubr.bf16.gmra.mxu0 %v1145
        %v1180 = vpop.f32.mrf.mxu0
        %v1181 = vadd.f32 0.0, %v1180
        %v1182 = vpop.f32.mrf.mxu0
        %v1183 = vadd.f32 0.0, %v1182
        %v1184 = vpop.f32.mrf.mxu0
        %v1185 = vpop.f32.mrf.mxu0
        %1186 = vdwg.mxu0
        %1187 = vmatprep.subr.bf16.mxu0 0
        %1188 = vmatpush1.bf16.msra.mxu0 %v898
        %1189 = vmatprep.subr.bf16.mxu0 0
        %1190 = vmatpush1.bf16.msra.mxu0 %v895
        %1191 = vmatprep.subr.bf16.mxu0 0
        %1192 = vmatpush1.bf16.msra.mxu0 %v892
        %1193 = vmatprep.subr.bf16.mxu0 0
        %1194 = vmatpush1.bf16.msra.mxu0 %v889
        %1195 = vmatprep.subr.bf16.mxu0 0
        %1196 = vmatpush1.bf16.msra.mxu0 %v886
        %1197 = vmatprep.subr.bf16.mxu0 0
        %1198 = vmatpush1.bf16.msra.mxu0 %v883
        %1199 = vmatprep.subr.bf16.mxu0 0
        %1200 = vmatpush1.bf16.msra.mxu0 %v880
        %1201 = vmatprep.subr.bf16.mxu0 0
        %1202 = vmatpush1.bf16.msra.mxu0 %v877
        %1203 = vmatprep.subr.bf16.mxu0 0
        %1204 = vmatpush2.bf16.msra.mxu0 0
        %1205 = vmatprep.subr.bf16.mxu0 0
        %1206 = vmatpush2.bf16.msra.mxu0 0
        %1207 = vmatprep.subr.bf16.mxu0 0
        %1208 = vmatpush2.bf16.msra.mxu0 0
        %1209 = vmatprep.subr.bf16.mxu0 0
        %1210 = vmatpush2.bf16.msra.mxu0 0
        %1211 = vmatprep.subr.bf16.mxu0 0
        %1212 = vmatpush2.bf16.msra.mxu0 0
        %1213 = vmatprep.subr.bf16.mxu0 0
        %1214 = vmatpush2.bf16.msra.mxu0 0
        %1215 = vmatprep.subr.bf16.mxu0 0
        %1216 = vmatpush2.bf16.msra.mxu0 0
        %1217 = vmatprep.subr.bf16.mxu0 0
        %1218 = vmatpush2.bf16.msra.mxu0 0
        %1219 = vmatprep.mubr.bf16.mxu0 0
        %1220 = vmatmul.mubr.bf16.gmra.mxu0 %v1145
        %v1221 = vpop.f32.mrf.mxu0
        %v1222 = vadd.f32 0.0, %v1221
        %v1223 = vpop.f32.mrf.mxu0
        %v1224 = vpop.f32.mrf.mxu0
        %v1225 = vpop.f32.mrf.mxu0
        %1226 = vdwg.mxu0
        %v1227 = vadd.f32 %v1142, %v1181
        %v1228 = vxor.u32 %v1227, 2147483648
        %v1229 = vmul.f32 %v1228, 1.442695
        %v1230 = vpow.pop %v1229
        %v1231 = vadd.f32 %v1230, 1.0
        %v1232 = vrcp.pop %v1231
        %v1233 = vmul.f32 1.0, %v1232
        %v1234 = vadd.f32 %v1143, %v1183
        %v1235 = vxor.u32 %v1234, 2147483648
        %v1236 = vmul.f32 %v1235, 1.442695
        %v1237 = vpow.pop %v1236
        %v1238 = vadd.f32 %v1237, 1.0
        %v1239 = vrcp.pop %v1238
        %v1240 = vmul.f32 1.0, %v1239
        %v1241 = vadd.f32 %v1222, %v785
        %v1242 = vmul.f32 %v1233, %v1241
        %v1243 = vadd.f32 %v1144, %v1242
        %v1244 = vtanh.pop %v1243
        %v1245 = vsub.f32 1.0, %v1240
        %v1246 = vmul.f32 %v1245, %v1244
        %v1247 = vmul.f32 %v1240, %v1136
        %v1248 = vadd.f32 %v1246, %v1247
        %s1249 = scalar_lea.vmem [#allocation3], 16
        %1250 = vst [vmem:[%s1249] sm:$0xff] %v1248
        %s1251 = smul.u32 3, 3
        %s1252 = smul.addr %s1251, 8
        %s1253 = scalar_lea.vmem [#allocation2], %s1252
        %v1254 = vld [vmem:[%s1253] sm:$0xff]
        %v1255 = vld [vmem:[%s1253 + $0x8] sm:$0xff]
        %v1256 = vld [vmem:[%s1253 + $0x10] sm:$0xff]
        %v1257 = vpack.c.bf16 %v1248, %v1248
        %1258 = vmatprep.subr.bf16.mxu0 %v897
        %1259 = vmatpush1.bf16.msra.mxu0 %v896
        %1260 = vmatprep.subr.bf16.mxu0 %v894
        %1261 = vmatpush1.bf16.msra.mxu0 %v893
        %1262 = vmatprep.subr.bf16.mxu0 %v891
        %1263 = vmatpush1.bf16.msra.mxu0 %v890
        %1264 = vmatprep.subr.bf16.mxu0 %v888
        %1265 = vmatpush1.bf16.msra.mxu0 %v887
        %1266 = vmatprep.subr.bf16.mxu0 %v885
        %1267 = vmatpush1.bf16.msra.mxu0 %v884
        %1268 = vmatprep.subr.bf16.mxu0 %v882
        %1269 = vmatpush1.bf16.msra.mxu0 %v881
        %1270 = vmatprep.subr.bf16.mxu0 %v879
        %1271 = vmatpush1.bf16.msra.mxu0 %v878
        %1272 = vmatprep.subr.bf16.mxu0 %v876
        %1273 = vmatpush1.bf16.msra.mxu0 %v875
        %1274 = vmatprep.subr.bf16.mxu0 0
        %1275 = vmatpush2.bf16.msra.mxu0 0
        %1276 = vmatprep.subr.bf16.mxu0 0
        %1277 = vmatpush2.bf16.msra.mxu0 0
        %1278 = vmatprep.subr.bf16.mxu0 0
        %1279 = vmatpush2.bf16.msra.mxu0 0
        %1280 = vmatprep.subr.bf16.mxu0 0
        %1281 = vmatpush2.bf16.msra.mxu0 0
        %1282 = vmatprep.subr.bf16.mxu0 0
        %1283 = vmatpush2.bf16.msra.mxu0 0
        %1284 = vmatprep.subr.bf16.mxu0 0
        %1285 = vmatpush2.bf16.msra.mxu0 0
        %1286 = vmatprep.subr.bf16.mxu0 0
        %1287 = vmatpush2.bf16.msra.mxu0 0
        %1288 = vmatprep.subr.bf16.mxu0 0
        %1289 = vmatpush2.bf16.msra.mxu0 0
        %1290 = vmatprep.mubr.bf16.mxu0 0
        %1291 = vmatmul.mubr.bf16.gmra.mxu0 %v1257
        %v1292 = vpop.f32.mrf.mxu0
        %v1293 = vadd.f32 0.0, %v1292
        %v1294 = vpop.f32.mrf.mxu0
        %v1295 = vadd.f32 0.0, %v1294
        %v1296 = vpop.f32.mrf.mxu0
        %v1297 = vpop.f32.mrf.mxu0
        %1298 = vdwg.mxu0
        %1299 = vmatprep.subr.bf16.mxu0 0
        %1300 = vmatpush1.bf16.msra.mxu0 %v898
        %1301 = vmatprep.subr.bf16.mxu0 0
        %1302 = vmatpush1.bf16.msra.mxu0 %v895
        %1303 = vmatprep.subr.bf16.mxu0 0
        %1304 = vmatpush1.bf16.msra.mxu0 %v892
        %1305 = vmatprep.subr.bf16.mxu0 0
        %1306 = vmatpush1.bf16.msra.mxu0 %v889
        %1307 = vmatprep.subr.bf16.mxu0 0
        %1308 = vmatpush1.bf16.msra.mxu0 %v886
        %1309 = vmatprep.subr.bf16.mxu0 0
        %1310 = vmatpush1.bf16.msra.mxu0 %v883
        %1311 = vmatprep.subr.bf16.mxu0 0
        %1312 = vmatpush1.bf16.msra.mxu0 %v880
        %1313 = vmatprep.subr.bf16.mxu0 0
        %1314 = vmatpush1.bf16.msra.mxu0 %v877
        %1315 = vmatprep.subr.bf16.mxu0 0
        %1316 = vmatpush2.bf16.msra.mxu0 0
        %1317 = vmatprep.subr.bf16.mxu0 0
        %1318 = vmatpush2.bf16.msra.mxu0 0
        %1319 = vmatprep.subr.bf16.mxu0 0
        %1320 = vmatpush2.bf16.msra.mxu0 0
        %1321 = vmatprep.subr.bf16.mxu0 0
        %1322 = vmatpush2.bf16.msra.mxu0 0
        %1323 = vmatprep.subr.bf16.mxu0 0
        %1324 = vmatpush2.bf16.msra.mxu0 0
        %1325 = vmatprep.subr.bf16.mxu0 0
        %1326 = vmatpush2.bf16.msra.mxu0 0
        %1327 = vmatprep.subr.bf16.mxu0 0
        %1328 = vmatpush2.bf16.msra.mxu0 0
        %1329 = vmatprep.subr.bf16.mxu0 0
        %1330 = vmatpush2.bf16.msra.mxu0 0
        %1331 = vmatprep.mubr.bf16.mxu0 0
        %1332 = vmatmul.mubr.bf16.gmra.mxu0 %v1257
        %v1333 = vpop.f32.mrf.mxu0
        %v1334 = vadd.f32 0.0, %v1333
        %v1335 = vpop.f32.mrf.mxu0
        %v1336 = vpop.f32.mrf.mxu0
        %v1337 = vpop.f32.mrf.mxu0
        %1338 = vdwg.mxu0
        %v1339 = vadd.f32 %v1254, %v1293
        %v1340 = vxor.u32 %v1339, 2147483648
        %v1341 = vmul.f32 %v1340, 1.442695
        %v1342 = vpow.pop %v1341
        %v1343 = vadd.f32 %v1342, 1.0
        %v1344 = vrcp.pop %v1343
        %v1345 = vmul.f32 1.0, %v1344
        %v1346 = vadd.f32 %v1255, %v1295
        %v1347 = vxor.u32 %v1346, 2147483648
        %v1348 = vmul.f32 %v1347, 1.442695
        %v1349 = vpow.pop %v1348
        %v1350 = vadd.f32 %v1349, 1.0
        %v1351 = vrcp.pop %v1350
        %v1352 = vmul.f32 1.0, %v1351
        %v1353 = vadd.f32 %v1334, %v785
        %v1354 = vmul.f32 %v1345, %v1353
        %v1355 = vadd.f32 %v1256, %v1354
        %v1356 = vtanh.pop %v1355
        %v1357 = vsub.f32 1.0, %v1352
        %v1358 = vmul.f32 %v1357, %v1356
        %v1359 = vmul.f32 %v1352, %v1248
        %v1360 = vadd.f32 %v1358, %v1359
        %s1361 = scalar_lea.vmem [#allocation3], 24
        %1362 = vst [vmem:[%s1361] sm:$0xff] %v1360
        %1363 = vst [vmem:[#allocation4] sm:$0xff] %v1360
        %v1364 = vld [vmem:[#allocation3] sm:$0xff]
        %v1365 = vld [vmem:[#allocation3 + $0x8] sm:$0xff]
        %v1366 = vld [vmem:[#allocation3 + $0x10] sm:$0xff]
        %v1367 = vld [vmem:[#allocation3 + $0x18] sm:$0xff]
        %v1368 = vpack.c.bf16 %v1365, %v1364
        %v1369 = vpack.c.bf16 %v1367, %v1366
        %v1370 = vld [vmem:[#allocation5] sm:$0xff]
        %v1371 = vld [vmem:[#allocation5 + $0x8] sm:$0xf]
        %v1372 = vld [vmem:[#allocation5 + $0xc] sm:$0xff]
        %v1373 = vld [vmem:[#allocation5 + $0x14] sm:$0xf]
        %v1374 = vld [vmem:[#allocation5 + $0x18] sm:$0xff]
        %v1375 = vld [vmem:[#allocation5 + $0x20] sm:$0xf]
        %v1376 = vld [vmem:[#allocation5 + $0x24] sm:$0xff]
        %v1377 = vld [vmem:[#allocation5 + $0x2c] sm:$0xf]
        %v1378 = vld [vmem:[#allocation5 + $0x30] sm:$0xff]
        %v1379 = vld [vmem:[#allocation5 + $0x38] sm:$0xf]
        %v1380 = vld [vmem:[#allocation5 + $0x3c] sm:$0xff]
        %v1381 = vld [vmem:[#allocation5 + $0x44] sm:$0xf]
        %v1382 = vld [vmem:[#allocation5 + $0x48] sm:$0xff]
        %v1383 = vld [vmem:[#allocation5 + $0x50] sm:$0xf]
        %v1384 = vld [vmem:[#allocation5 + $0x54] sm:$0xff]
        %v1385 = vld [vmem:[#allocation5 + $0x5c] sm:$0xf]
        %v1386 = vld [vmem:[#allocation5 + $0x60] sm:$0xff]
        %v1387 = vld [vmem:[#allocation5 + $0x68] sm:$0xf]
        %v1388 = vld [vmem:[#allocation5 + $0x6c] sm:$0xff]
        %v1389 = vld [vmem:[#allocation5 + $0x74] sm:$0xf]
        %v1390 = vld [vmem:[#allocation5 + $0x78] sm:$0xff]
        %v1391 = vld [vmem:[#allocation5 + $0x80] sm:$0xf]
        %v1392 = vld [vmem:[#allocation5 + $0x84] sm:$0xff]
        %v1393 = vld [vmem:[#allocation5 + $0x8c] sm:$0xf]
        %v1394 = vld [vmem:[#allocation5 + $0x90] sm:$0xff]
        %v1395 = vld [vmem:[#allocation5 + $0x98] sm:$0xf]
        %v1396 = vld [vmem:[#allocation5 + $0x9c] sm:$0xff]
        %v1397 = vld [vmem:[#allocation5 + $0xa4] sm:$0xf]
        %v1398 = vld [vmem:[#allocation5 + $0xa8] sm:$0xff]
        %v1399 = vld [vmem:[#allocation5 + $0xb0] sm:$0xf]
        %v1400 = vld [vmem:[#allocation5 + $0xb4] sm:$0xff]
        %v1401 = vld [vmem:[#allocation5 + $0xbc] sm:$0xf]
        %v1402 = vld [vmem:[%s7] sm:$0x7]
        %v1404 = vlaneseq
        %v1405 = vshrl.u32 %v1404, 7
        %v1406 = vsub.s32 0, %v1405
        %v1407 = vrot.slane %v1402, %v1406
        %v1408 = vlaneseq
        %v1409 = vshrl.u32 %v1408, 7
        %v1410 = vsub.s32 1, %v1409
        %v1411 = vrot.slane %v1402, %v1410
        %v1412 = vlaneseq
        %v1413 = vshrl.u32 %v1412, 7
        %v1414 = vsub.s32 2, %v1413
        %v1415 = vrot.slane %v1402, %v1414
        %v1451 = vunpack.c.l.b16 %v1370
        %v1452 = vunpack.c.h.b16 %v1370
        %v1453 = vunpack.c.l.b16 %v1371
        %v1454 = vunpack.c.l.b16 %v1372
        %v1455 = vunpack.c.h.b16 %v1372
        %v1456 = vunpack.c.l.b16 %v1373
        %v1457 = vunpack.c.l.b16 %v1374
        %v1458 = vunpack.c.h.b16 %v1374
        %v1459 = vunpack.c.l.b16 %v1375
        %v1460 = vunpack.c.l.b16 %v1376
        %v1461 = vunpack.c.h.b16 %v1376
        %v1462 = vunpack.c.l.b16 %v1377
        %v1463 = vunpack.c.l.b16 %v1378
        %v1464 = vunpack.c.h.b16 %v1378
        %v1465 = vunpack.c.l.b16 %v1379
        %v1466 = vunpack.c.l.b16 %v1380
        %v1467 = vunpack.c.h.b16 %v1380
        %v1468 = vunpack.c.l.b16 %v1381
        %v1469 = vunpack.c.l.b16 %v1382
        %v1470 = vunpack.c.h.b16 %v1382
        %v1471 = vunpack.c.l.b16 %v1383
        %v1472 = vunpack.c.l.b16 %v1384
        %v1473 = vunpack.c.h.b16 %v1384
        %v1474 = vunpack.c.l.b16 %v1385
        %v1475 = vunpack.c.l.b16 %v1386
        %v1476 = vunpack.c.h.b16 %v1386
        %v1477 = vunpack.c.l.b16 %v1387
        %v1478 = vunpack.c.l.b16 %v1388
        %v1479 = vunpack.c.h.b16 %v1388
        %v1480 = vunpack.c.l.b16 %v1389
        %v1481 = vunpack.c.l.b16 %v1390
        %v1482 = vunpack.c.h.b16 %v1390
        %v1483 = vunpack.c.l.b16 %v1391
        %v1484 = vunpack.c.l.b16 %v1392
        %v1485 = vunpack.c.h.b16 %v1392
        %v1486 = vunpack.c.l.b16 %v1393
        %v1487 = vunpack.c.l.b16 %v1394
        %v1488 = vunpack.c.h.b16 %v1394
        %v1489 = vunpack.c.l.b16 %v1395
        %v1490 = vunpack.c.l.b16 %v1396
        %v1491 = vunpack.c.h.b16 %v1396
        %v1492 = vunpack.c.l.b16 %v1397
        %v1493 = vunpack.c.l.b16 %v1398
        %v1494 = vunpack.c.h.b16 %v1398
        %v1495 = vunpack.c.l.b16 %v1399
        %v1496 = vunpack.c.l.b16 %v1400
        %v1497 = vunpack.c.h.b16 %v1400
        %v1498 = vunpack.c.l.b16 %v1401
        %v1499 = vpack.c.b16 %v1454, %v1451
        %v1500 = vpack.c.b16 %v1455, %v1452
        %v1501 = vpack.c.b16 %v1456, %v1453
        %v1502 = vpack.c.b16 %v1460, %v1457
        %v1503 = vpack.c.b16 %v1461, %v1458
        %v1504 = vpack.c.b16 %v1462, %v1459
        %v1505 = vpack.c.b16 %v1466, %v1463
        %v1506 = vpack.c.b16 %v1467, %v1464
        %v1507 = vpack.c.b16 %v1468, %v1465
        %v1508 = vpack.c.b16 %v1472, %v1469
        %v1509 = vpack.c.b16 %v1473, %v1470
        %v1510 = vpack.c.b16 %v1474, %v1471
        %v1511 = vpack.c.b16 %v1478, %v1475
        %v1512 = vpack.c.b16 %v1479, %v1476
        %v1513 = vpack.c.b16 %v1480, %v1477
        %v1514 = vpack.c.b16 %v1484, %v1481
        %v1515 = vpack.c.b16 %v1485, %v1482
        %v1516 = vpack.c.b16 %v1486, %v1483
        %v1517 = vpack.c.b16 %v1490, %v1487
        %v1518 = vpack.c.b16 %v1491, %v1488
        %v1519 = vpack.c.b16 %v1492, %v1489
        %v1520 = vpack.c.b16 %v1496, %v1493
        %v1521 = vpack.c.b16 %v1497, %v1494
        %v1522 = vpack.c.b16 %v1498, %v1495
        %1547 = vmatprep.subr.bf16.mxu0 %v1521
        %1548 = vmatpush1.bf16.msra.mxu0 %v1520
        %1549 = vmatprep.subr.bf16.mxu0 %v1518
        %1550 = vmatpush1.bf16.msra.mxu0 %v1517
        %1551 = vmatprep.subr.bf16.mxu0 %v1515
        %1552 = vmatpush1.bf16.msra.mxu0 %v1514
        %1553 = vmatprep.subr.bf16.mxu0 %v1512
        %1554 = vmatpush1.bf16.msra.mxu0 %v1511
        %1555 = vmatprep.subr.bf16.mxu0 %v1509
        %1556 = vmatpush1.bf16.msra.mxu0 %v1508
        %1557 = vmatprep.subr.bf16.mxu0 %v1506
        %1558 = vmatpush1.bf16.msra.mxu0 %v1505
        %1559 = vmatprep.subr.bf16.mxu0 %v1503
        %1560 = vmatpush1.bf16.msra.mxu0 %v1502
        %1561 = vmatprep.subr.bf16.mxu0 %v1500
        %1562 = vmatpush1.bf16.msra.mxu0 %v1499
        %1563 = vmatprep.subr.bf16.mxu0 0
        %1564 = vmatpush2.bf16.msra.mxu0 0
        %1565 = vmatprep.subr.bf16.mxu0 0
        %1566 = vmatpush2.bf16.msra.mxu0 0
        %1567 = vmatprep.subr.bf16.mxu0 0
        %1568 = vmatpush2.bf16.msra.mxu0 0
        %1569 = vmatprep.subr.bf16.mxu0 0
        %1570 = vmatpush2.bf16.msra.mxu0 0
        %1571 = vmatprep.subr.bf16.mxu0 0
        %1572 = vmatpush2.bf16.msra.mxu0 0
        %1573 = vmatprep.subr.bf16.mxu0 0
        %1574 = vmatpush2.bf16.msra.mxu0 0
        %1575 = vmatprep.subr.bf16.mxu0 0
        %1576 = vmatpush2.bf16.msra.mxu0 0
        %1577 = vmatprep.subr.bf16.mxu0 0
        %1578 = vmatpush2.bf16.msra.mxu0 0
        %1579 = vmatprep.mubr.bf16.mxu0 0
        %1580 = vmatmul.mubr.bf16.gmra.mxu0 %v1368
        %v1581 = vpop.f32.mrf.mxu0
        %v1582 = vadd.f32 %v1407, %v1581
        %v1583 = vpop.f32.mrf.mxu0
        %v1584 = vadd.f32 %v1411, %v1583
        %v1585 = vpop.f32.mrf.mxu0
        %v1586 = vadd.f32 %v1407, %v1585
        %v1587 = vpop.f32.mrf.mxu0
        %v1588 = vadd.f32 %v1411, %v1587
        %1589 = vmatprep.mubr.bf16.mxu0 0
        %1590 = vmatmul.mubr.bf16.gmra.mxu0 %v1369
        %v1591 = vpop.f32.mrf.mxu0
        %v1592 = vadd.f32 %v1407, %v1591
        %v1593 = vpop.f32.mrf.mxu0
        %v1594 = vadd.f32 %v1411, %v1593
        %v1595 = vpop.f32.mrf.mxu0
        %v1596 = vadd.f32 %v1407, %v1595
        %v1597 = vpop.f32.mrf.mxu0
        %v1598 = vadd.f32 %v1411, %v1597
        %1599 = vdwg.mxu0
        %1600 = vmatprep.subr.bf16.mxu0 0
        %1601 = vmatpush1.bf16.msra.mxu0 %v1522
        %1602 = vmatprep.subr.bf16.mxu0 0
        %1603 = vmatpush1.bf16.msra.mxu0 %v1519
        %1604 = vmatprep.subr.bf16.mxu0 0
        %1605 = vmatpush1.bf16.msra.mxu0 %v1516
        %1606 = vmatprep.subr.bf16.mxu0 0
        %1607 = vmatpush1.bf16.msra.mxu0 %v1513
        %1608 = vmatprep.subr.bf16.mxu0 0
        %1609 = vmatpush1.bf16.msra.mxu0 %v1510
        %1610 = vmatprep.subr.bf16.mxu0 0
        %1611 = vmatpush1.bf16.msra.mxu0 %v1507
        %1612 = vmatprep.subr.bf16.mxu0 0
        %1613 = vmatpush1.bf16.msra.mxu0 %v1504
        %1614 = vmatprep.subr.bf16.mxu0 0
        %1615 = vmatpush1.bf16.msra.mxu0 %v1501
        %1616 = vmatprep.subr.bf16.mxu0 0
        %1617 = vmatpush2.bf16.msra.mxu0 0
        %1618 = vmatprep.subr.bf16.mxu0 0
        %1619 = vmatpush2.bf16.msra.mxu0 0
        %1620 = vmatprep.subr.bf16.mxu0 0
        %1621 = vmatpush2.bf16.msra.mxu0 0
        %1622 = vmatprep.subr.bf16.mxu0 0
        %1623 = vmatpush2.bf16.msra.mxu0 0
        %1624 = vmatprep.subr.bf16.mxu0 0
        %1625 = vmatpush2.bf16.msra.mxu0 0
        %1626 = vmatprep.subr.bf16.mxu0 0
        %1627 = vmatpush2.bf16.msra.mxu0 0
        %1628 = vmatprep.subr.bf16.mxu0 0
        %1629 = vmatpush2.bf16.msra.mxu0 0
        %1630 = vmatprep.subr.bf16.mxu0 0
        %1631 = vmatpush2.bf16.msra.mxu0 0
        %1632 = vmatprep.mubr.bf16.mxu0 0
        %1633 = vmatmul.mubr.bf16.gmra.mxu0 %v1368
        %v1634 = vpop.f32.mrf.mxu0
        %v1635 = vadd.f32 %v1415, %v1634
        %v1636 = vpop.f32.mrf.mxu0
        %v1637 = vpop.f32.mrf.mxu0
        %v1638 = vadd.f32 %v1415, %v1637
        %v1639 = vpop.f32.mrf.mxu0
        %1640 = vmatprep.mubr.bf16.mxu0 0
        %1641 = vmatmul.mubr.bf16.gmra.mxu0 %v1369
        %v1642 = vpop.f32.mrf.mxu0
        %v1643 = vadd.f32 %v1415, %v1642
        %v1644 = vpop.f32.mrf.mxu0
        %v1645 = vpop.f32.mrf.mxu0
        %v1646 = vadd.f32 %v1415, %v1645
        %v1647 = vpop.f32.mrf.mxu0
        %1648 = vdwg.mxu0
        %1649 = vst [vmem:[#allocation2] sm:$0xff] %v1582
        %1650 = vst [vmem:[#allocation2 + $0x8] sm:$0xff] %v1584
        %1651 = vst [vmem:[#allocation2 + $0x10] sm:$0xff] %v1635
        %1652 = vst [vmem:[#allocation2 + $0x18] sm:$0xff] %v1586
        %1653 = vst [vmem:[#allocation2 + $0x20] sm:$0xff] %v1588
        %1654 = vst [vmem:[#allocation2 + $0x28] sm:$0xff] %v1638
        %1655 = vst [vmem:[#allocation2 + $0x30] sm:$0xff] %v1592
        %1656 = vst [vmem:[#allocation2 + $0x38] sm:$0xff] %v1594
        %1657 = vst [vmem:[#allocation2 + $0x40] sm:$0xff] %v1643
        %1658 = vst [vmem:[#allocation2 + $0x48] sm:$0xff] %v1596
        %1659 = vst [vmem:[#allocation2 + $0x50] sm:$0xff] %v1598
        %1660 = vst [vmem:[#allocation2 + $0x58] sm:$0xff] %v1646
        %v1661 = vld [vmem:[#allocation7] sm:$0xff]
        %v1662 = vld [vmem:[#allocation7 + $0x8] sm:$0xf]
        %v1663 = vld [vmem:[#allocation7 + $0xc] sm:$0xff]
        %v1664 = vld [vmem:[#allocation7 + $0x14] sm:$0xf]
        %v1665 = vld [vmem:[#allocation7 + $0x18] sm:$0xff]
        %v1666 = vld [vmem:[#allocation7 + $0x20] sm:$0xf]
        %v1667 = vld [vmem:[#allocation7 + $0x24] sm:$0xff]
        %v1668 = vld [vmem:[#allocation7 + $0x2c] sm:$0xf]
        %v1669 = vld [vmem:[#allocation7 + $0x30] sm:$0xff]
        %v1670 = vld [vmem:[#allocation7 + $0x38] sm:$0xf]
        %v1671 = vld [vmem:[#allocation7 + $0x3c] sm:$0xff]
        %v1672 = vld [vmem:[#allocation7 + $0x44] sm:$0xf]
        %v1673 = vld [vmem:[#allocation7 + $0x48] sm:$0xff]
        %v1674 = vld [vmem:[#allocation7 + $0x50] sm:$0xf]
        %v1675 = vld [vmem:[#allocation7 + $0x54] sm:$0xff]
        %v1676 = vld [vmem:[#allocation7 + $0x5c] sm:$0xf]
        %v1677 = vld [vmem:[#allocation7 + $0x60] sm:$0xff]
        %v1678 = vld [vmem:[#allocation7 + $0x68] sm:$0xf]
        %v1679 = vld [vmem:[#allocation7 + $0x6c] sm:$0xff]
        %v1680 = vld [vmem:[#allocation7 + $0x74] sm:$0xf]
        %v1681 = vld [vmem:[#allocation7 + $0x78] sm:$0xff]
        %v1682 = vld [vmem:[#allocation7 + $0x80] sm:$0xf]
        %v1683 = vld [vmem:[#allocation7 + $0x84] sm:$0xff]
        %v1684 = vld [vmem:[#allocation7 + $0x8c] sm:$0xf]
        %v1685 = vld [vmem:[#allocation7 + $0x90] sm:$0xff]
        %v1686 = vld [vmem:[#allocation7 + $0x98] sm:$0xf]
        %v1687 = vld [vmem:[#allocation7 + $0x9c] sm:$0xff]
        %v1688 = vld [vmem:[#allocation7 + $0xa4] sm:$0xf]
        %v1689 = vld [vmem:[#allocation7 + $0xa8] sm:$0xff]
        %v1690 = vld [vmem:[#allocation7 + $0xb0] sm:$0xf]
        %v1691 = vld [vmem:[#allocation7 + $0xb4] sm:$0xff]
        %v1692 = vld [vmem:[#allocation7 + $0xbc] sm:$0xf]
        %v1693 = vld [vmem:[%s8] sm:$0x1]
        %v1695 = vlaneseq
        %v1696 = vshrl.u32 %v1695, 7
        %v1697 = vsub.s32 0, %v1696
        %v1698 = vrot.slane %v1693, %v1697
        %s1700 = scalar_lea.vmem [#allocation4], 8
        %v1701 = vld [vmem:[%s1700] sm:$0xff]
        %v1702 = vld [vmem:[%s790] sm:$0xff]
        %v1703 = vld [vmem:[%s790 + $0x8] sm:$0xff]
        %v1704 = vld [vmem:[%s790 + $0x10] sm:$0xff]
        %v1705 = vpack.c.bf16 %v1701, %v1701
        %v1738 = vunpack.c.l.b16 %v1661
        %v1739 = vunpack.c.h.b16 %v1661
        %v1740 = vunpack.c.l.b16 %v1662
        %v1741 = vunpack.c.l.b16 %v1663
        %v1742 = vunpack.c.h.b16 %v1663
        %v1743 = vunpack.c.l.b16 %v1664
        %v1744 = vunpack.c.l.b16 %v1665
        %v1745 = vunpack.c.h.b16 %v1665
        %v1746 = vunpack.c.l.b16 %v1666
        %v1747 = vunpack.c.l.b16 %v1667
        %v1748 = vunpack.c.h.b16 %v1667
        %v1749 = vunpack.c.l.b16 %v1668
        %v1750 = vunpack.c.l.b16 %v1669
        %v1751 = vunpack.c.h.b16 %v1669
        %v1752 = vunpack.c.l.b16 %v1670
        %v1753 = vunpack.c.l.b16 %v1671
        %v1754 = vunpack.c.h.b16 %v1671
        %v1755 = vunpack.c.l.b16 %v1672
        %v1756 = vunpack.c.l.b16 %v1673
        %v1757 = vunpack.c.h.b16 %v1673
        %v1758 = vunpack.c.l.b16 %v1674
        %v1759 = vunpack.c.l.b16 %v1675
        %v1760 = vunpack.c.h.b16 %v1675
        %v1761 = vunpack.c.l.b16 %v1676
        %v1762 = vunpack.c.l.b16 %v1677
        %v1763 = vunpack.c.h.b16 %v1677
        %v1764 = vunpack.c.l.b16 %v1678
        %v1765 = vunpack.c.l.b16 %v1679
        %v1766 = vunpack.c.h.b16 %v1679
        %v1767 = vunpack.c.l.b16 %v1680
        %v1768 = vunpack.c.l.b16 %v1681
        %v1769 = vunpack.c.h.b16 %v1681
        %v1770 = vunpack.c.l.b16 %v1682
        %v1771 = vunpack.c.l.b16 %v1683
        %v1772 = vunpack.c.h.b16 %v1683
        %v1773 = vunpack.c.l.b16 %v1684
        %v1774 = vunpack.c.l.b16 %v1685
        %v1775 = vunpack.c.h.b16 %v1685
        %v1776 = vunpack.c.l.b16 %v1686
        %v1777 = vunpack.c.l.b16 %v1687
        %v1778 = vunpack.c.h.b16 %v1687
        %v1779 = vunpack.c.l.b16 %v1688
        %v1780 = vunpack.c.l.b16 %v1689
        %v1781 = vunpack.c.h.b16 %v1689
        %v1782 = vunpack.c.l.b16 %v1690
        %v1783 = vunpack.c.l.b16 %v1691
        %v1784 = vunpack.c.h.b16 %v1691
        %v1785 = vunpack.c.l.b16 %v1692
        %v1786 = vpack.c.b16 %v1741, %v1738
        %v1787 = vpack.c.b16 %v1742, %v1739
        %v1788 = vpack.c.b16 %v1743, %v1740
        %v1789 = vpack.c.b16 %v1747, %v1744
        %v1790 = vpack.c.b16 %v1748, %v1745
        %v1791 = vpack.c.b16 %v1749, %v1746
        %v1792 = vpack.c.b16 %v1753, %v1750
        %v1793 = vpack.c.b16 %v1754, %v1751
        %v1794 = vpack.c.b16 %v1755, %v1752
        %v1795 = vpack.c.b16 %v1759, %v1756
        %v1796 = vpack.c.b16 %v1760, %v1757
        %v1797 = vpack.c.b16 %v1761, %v1758
        %v1798 = vpack.c.b16 %v1765, %v1762
        %v1799 = vpack.c.b16 %v1766, %v1763
        %v1800 = vpack.c.b16 %v1767, %v1764
        %v1801 = vpack.c.b16 %v1771, %v1768
        %v1802 = vpack.c.b16 %v1772, %v1769
        %v1803 = vpack.c.b16 %v1773, %v1770
        %v1804 = vpack.c.b16 %v1777, %v1774
        %v1805 = vpack.c.b16 %v1778, %v1775
        %v1806 = vpack.c.b16 %v1779, %v1776
        %v1807 = vpack.c.b16 %v1783, %v1780
        %v1808 = vpack.c.b16 %v1784, %v1781
        %v1809 = vpack.c.b16 %v1785, %v1782
        %1834 = vmatprep.subr.bf16.mxu0 %v1808
        %1835 = vmatpush1.bf16.msra.mxu0 %v1807
        %1836 = vmatprep.subr.bf16.mxu0 %v1805
        %1837 = vmatpush1.bf16.msra.mxu0 %v1804
        %1838 = vmatprep.subr.bf16.mxu0 %v1802
        %1839 = vmatpush1.bf16.msra.mxu0 %v1801
        %1840 = vmatprep.subr.bf16.mxu0 %v1799
        %1841 = vmatpush1.bf16.msra.mxu0 %v1798
        %1842 = vmatprep.subr.bf16.mxu0 %v1796
        %1843 = vmatpush1.bf16.msra.mxu0 %v1795
        %1844 = vmatprep.subr.bf16.mxu0 %v1793
        %1845 = vmatpush1.bf16.msra.mxu0 %v1792
        %1846 = vmatprep.subr.bf16.mxu0 %v1790
        %1847 = vmatpush1.bf16.msra.mxu0 %v1789
        %1848 = vmatprep.subr.bf16.mxu0 %v1787
        %1849 = vmatpush1.bf16.msra.mxu0 %v1786
        %1850 = vmatprep.subr.bf16.mxu0 0
        %1851 = vmatpush2.bf16.msra.mxu0 0
        %1852 = vmatprep.subr.bf16.mxu0 0
        %1853 = vmatpush2.bf16.msra.mxu0 0
        %1854 = vmatprep.subr.bf16.mxu0 0
        %1855 = vmatpush2.bf16.msra.mxu0 0
        %1856 = vmatprep.subr.bf16.mxu0 0
        %1857 = vmatpush2.bf16.msra.mxu0 0
        %1858 = vmatprep.subr.bf16.mxu0 0
        %1859 = vmatpush2.bf16.msra.mxu0 0
        %1860 = vmatprep.subr.bf16.mxu0 0
        %1861 = vmatpush2.bf16.msra.mxu0 0
        %1862 = vmatprep.subr.bf16.mxu0 0
        %1863 = vmatpush2.bf16.msra.mxu0 0
        %1864 = vmatprep.subr.bf16.mxu0 0
        %1865 = vmatpush2.bf16.msra.mxu0 0
        %1866 = vmatprep.mubr.bf16.mxu0 0
        %1867 = vmatmul.mubr.bf16.gmra.mxu0 %v1705
        %v1868 = vpop.f32.mrf.mxu0
        %v1869 = vadd.f32 0.0, %v1868
        %v1870 = vpop.f32.mrf.mxu0
        %v1871 = vadd.f32 0.0, %v1870
        %v1872 = vpop.f32.mrf.mxu0
        %v1873 = vpop.f32.mrf.mxu0
        %1874 = vdwg.mxu0
        %1875 = vmatprep.subr.bf16.mxu0 0
        %1876 = vmatpush1.bf16.msra.mxu0 %v1809
        %1877 = vmatprep.subr.bf16.mxu0 0
        %1878 = vmatpush1.bf16.msra.mxu0 %v1806
        %1879 = vmatprep.subr.bf16.mxu0 0
        %1880 = vmatpush1.bf16.msra.mxu0 %v1803
        %1881 = vmatprep.subr.bf16.mxu0 0
        %1882 = vmatpush1.bf16.msra.mxu0 %v1800
        %1883 = vmatprep.subr.bf16.mxu0 0
        %1884 = vmatpush1.bf16.msra.mxu0 %v1797
        %1885 = vmatprep.subr.bf16.mxu0 0
        %1886 = vmatpush1.bf16.msra.mxu0 %v1794
        %1887 = vmatprep.subr.bf16.mxu0 0
        %1888 = vmatpush1.bf16.msra.mxu0 %v1791
        %1889 = vmatprep.subr.bf16.mxu0 0
        %1890 = vmatpush1.bf16.msra.mxu0 %v1788
        %1891 = vmatprep.subr.bf16.mxu0 0
        %1892 = vmatpush2.bf16.msra.mxu0 0
        %1893 = vmatprep.subr.bf16.mxu0 0
        %1894 = vmatpush2.bf16.msra.mxu0 0
        %1895 = vmatprep.subr.bf16.mxu0 0
        %1896 = vmatpush2.bf16.msra.mxu0 0
        %1897 = vmatprep.subr.bf16.mxu0 0
        %1898 = vmatpush2.bf16.msra.mxu0 0
        %1899 = vmatprep.subr.bf16.mxu0 0
        %1900 = vmatpush2.bf16.msra.mxu0 0
        %1901 = vmatprep.subr.bf16.mxu0 0
        %1902 = vmatpush2.bf16.msra.mxu0 0
        %1903 = vmatprep.subr.bf16.mxu0 0
        %1904 = vmatpush2.bf16.msra.mxu0 0
        %1905 = vmatprep.subr.bf16.mxu0 0
        %1906 = vmatpush2.bf16.msra.mxu0 0
        %1907 = vmatprep.mubr.bf16.mxu0 0
        %1908 = vmatmul.mubr.bf16.gmra.mxu0 %v1705
        %v1909 = vpop.f32.mrf.mxu0
        %v1910 = vadd.f32 0.0, %v1909
        %v1911 = vpop.f32.mrf.mxu0
        %v1912 = vpop.f32.mrf.mxu0
        %v1913 = vpop.f32.mrf.mxu0
        %1914 = vdwg.mxu0
        %v1915 = vadd.f32 %v1702, %v1869
        %v1916 = vxor.u32 %v1915, 2147483648
        %v1917 = vmul.f32 %v1916, 1.442695
        %v1918 = vpow.pop %v1917
        %v1919 = vadd.f32 %v1918, 1.0
        %v1920 = vrcp.pop %v1919
        %v1921 = vmul.f32 1.0, %v1920
        %v1922 = vadd.f32 %v1703, %v1871
        %v1923 = vxor.u32 %v1922, 2147483648
        %v1924 = vmul.f32 %v1923, 1.442695
        %v1925 = vpow.pop %v1924
        %v1926 = vadd.f32 %v1925, 1.0
        %v1927 = vrcp.pop %v1926
        %v1928 = vmul.f32 1.0, %v1927
        %v1929 = vadd.f32 %v1910, %v1698
        %v1930 = vmul.f32 %v1921, %v1929
        %v1931 = vadd.f32 %v1704, %v1930
        %v1932 = vtanh.pop %v1931
        %v1933 = vsub.f32 1.0, %v1928
        %v1934 = vmul.f32 %v1933, %v1932
        %v1935 = vmul.f32 %v1928, %v1701
        %v1936 = vadd.f32 %v1934, %v1935
        %1937 = vst [vmem:[#allocation3] sm:$0xff] %v1936
        %v1938 = vld [vmem:[%s1029] sm:$0xff]
        %v1939 = vld [vmem:[%s1029 + $0x8] sm:$0xff]
        %v1940 = vld [vmem:[%s1029 + $0x10] sm:$0xff]
        %v1941 = vpack.c.bf16 %v1936, %v1936
        %1942 = vmatprep.subr.bf16.mxu0 %v1808
        %1943 = vmatpush1.bf16.msra.mxu0 %v1807
        %1944 = vmatprep.subr.bf16.mxu0 %v1805
        %1945 = vmatpush1.bf16.msra.mxu0 %v1804
        %1946 = vmatprep.subr.bf16.mxu0 %v1802
        %1947 = vmatpush1.bf16.msra.mxu0 %v1801
        %1948 = vmatprep.subr.bf16.mxu0 %v1799
        %1949 = vmatpush1.bf16.msra.mxu0 %v1798
        %1950 = vmatprep.subr.bf16.mxu0 %v1796
        %1951 = vmatpush1.bf16.msra.mxu0 %v1795
        %1952 = vmatprep.subr.bf16.mxu0 %v1793
        %1953 = vmatpush1.bf16.msra.mxu0 %v1792
        %1954 = vmatprep.subr.bf16.mxu0 %v1790
        %1955 = vmatpush1.bf16.msra.mxu0 %v1789
        %1956 = vmatprep.subr.bf16.mxu0 %v1787
        %1957 = vmatpush1.bf16.msra.mxu0 %v1786
        %1958 = vmatprep.subr.bf16.mxu0 0
        %1959 = vmatpush2.bf16.msra.mxu0 0
        %1960 = vmatprep.subr.bf16.mxu0 0
        %1961 = vmatpush2.bf16.msra.mxu0 0
        %1962 = vmatprep.subr.bf16.mxu0 0
        %1963 = vmatpush2.bf16.msra.mxu0 0
        %1964 = vmatprep.subr.bf16.mxu0 0
        %1965 = vmatpush2.bf16.msra.mxu0 0
        %1966 = vmatprep.subr.bf16.mxu0 0
        %1967 = vmatpush2.bf16.msra.mxu0 0
        %1968 = vmatprep.subr.bf16.mxu0 0
        %1969 = vmatpush2.bf16.msra.mxu0 0
        %1970 = vmatprep.subr.bf16.mxu0 0
        %1971 = vmatpush2.bf16.msra.mxu0 0
        %1972 = vmatprep.subr.bf16.mxu0 0
        %1973 = vmatpush2.bf16.msra.mxu0 0
        %1974 = vmatprep.mubr.bf16.mxu0 0
        %1975 = vmatmul.mubr.bf16.gmra.mxu0 %v1941
        %v1976 = vpop.f32.mrf.mxu0
        %v1977 = vadd.f32 0.0, %v1976
        %v1978 = vpop.f32.mrf.mxu0
        %v1979 = vadd.f32 0.0, %v1978
        %v1980 = vpop.f32.mrf.mxu0
        %v1981 = vpop.f32.mrf.mxu0
        %1982 = vdwg.mxu0
        %1983 = vmatprep.subr.bf16.mxu0 0
        %1984 = vmatpush1.bf16.msra.mxu0 %v1809
        %1985 = vmatprep.subr.bf16.mxu0 0
        %1986 = vmatpush1.bf16.msra.mxu0 %v1806
        %1987 = vmatprep.subr.bf16.mxu0 0
        %1988 = vmatpush1.bf16.msra.mxu0 %v1803
        %1989 = vmatprep.subr.bf16.mxu0 0
        %1990 = vmatpush1.bf16.msra.mxu0 %v1800
        %1991 = vmatprep.subr.bf16.mxu0 0
        %1992 = vmatpush1.bf16.msra.mxu0 %v1797
        %1993 = vmatprep.subr.bf16.mxu0 0
        %1994 = vmatpush1.bf16.msra.mxu0 %v1794
        %1995 = vmatprep.subr.bf16.mxu0 0
        %1996 = vmatpush1.bf16.msra.mxu0 %v1791
        %1997 = vmatprep.subr.bf16.mxu0 0
        %1998 = vmatpush1.bf16.msra.mxu0 %v1788
        %1999 = vmatprep.subr.bf16.mxu0 0
        %2000 = vmatpush2.bf16.msra.mxu0 0
        %2001 = vmatprep.subr.bf16.mxu0 0
        %2002 = vmatpush2.bf16.msra.mxu0 0
        %2003 = vmatprep.subr.bf16.mxu0 0
        %2004 = vmatpush2.bf16.msra.mxu0 0
        %2005 = vmatprep.subr.bf16.mxu0 0
        %2006 = vmatpush2.bf16.msra.mxu0 0
        %2007 = vmatprep.subr.bf16.mxu0 0
        %2008 = vmatpush2.bf16.msra.mxu0 0
        %2009 = vmatprep.subr.bf16.mxu0 0
        %2010 = vmatpush2.bf16.msra.mxu0 0
        %2011 = vmatprep.subr.bf16.mxu0 0
        %2012 = vmatpush2.bf16.msra.mxu0 0
        %2013 = vmatprep.subr.bf16.mxu0 0
        %2014 = vmatpush2.bf16.msra.mxu0 0
        %2015 = vmatprep.mubr.bf16.mxu0 0
        %2016 = vmatmul.mubr.bf16.gmra.mxu0 %v1941
        %v2017 = vpop.f32.mrf.mxu0
        %v2018 = vadd.f32 0.0, %v2017
        %v2019 = vpop.f32.mrf.mxu0
        %v2020 = vpop.f32.mrf.mxu0
        %v2021 = vpop.f32.mrf.mxu0
        %2022 = vdwg.mxu0
        %v2023 = vadd.f32 %v1938, %v1977
        %v2024 = vxor.u32 %v2023, 2147483648
        %v2025 = vmul.f32 %v2024, 1.442695
        %v2026 = vpow.pop %v2025
        %v2027 = vadd.f32 %v2026, 1.0
        %v2028 = vrcp.pop %v2027
        %v2029 = vmul.f32 1.0, %v2028
        %v2030 = vadd.f32 %v1939, %v1979
        %v2031 = vxor.u32 %v2030, 2147483648
        %v2032 = vmul.f32 %v2031, 1.442695
        %v2033 = vpow.pop %v2032
        %v2034 = vadd.f32 %v2033, 1.0
        %v2035 = vrcp.pop %v2034
        %v2036 = vmul.f32 1.0, %v2035
        %v2037 = vadd.f32 %v2018, %v1698
        %v2038 = vmul.f32 %v2029, %v2037
        %v2039 = vadd.f32 %v1940, %v2038
        %v2040 = vtanh.pop %v2039
        %v2041 = vsub.f32 1.0, %v2036
        %v2042 = vmul.f32 %v2041, %v2040
        %v2043 = vmul.f32 %v2036, %v1936
        %v2044 = vadd.f32 %v2042, %v2043
        %2045 = vst [vmem:[%s1137] sm:$0xff] %v2044
        %v2046 = vld [vmem:[%s1141] sm:$0xff]
        %v2047 = vld [vmem:[%s1141 + $0x8] sm:$0xff]
        %v2048 = vld [vmem:[%s1141 + $0x10] sm:$0xff]
        %v2049 = vpack.c.bf16 %v2044, %v2044
        %2050 = vmatprep.subr.bf16.mxu0 %v1808
        %2051 = vmatpush1.bf16.msra.mxu0 %v1807
        %2052 = vmatprep.subr.bf16.mxu0 %v1805
        %2053 = vmatpush1.bf16.msra.mxu0 %v1804
        %2054 = vmatprep.subr.bf16.mxu0 %v1802
        %2055 = vmatpush1.bf16.msra.mxu0 %v1801
        %2056 = vmatprep.subr.bf16.mxu0 %v1799
        %2057 = vmatpush1.bf16.msra.mxu0 %v1798
        %2058 = vmatprep.subr.bf16.mxu0 %v1796
        %2059 = vmatpush1.bf16.msra.mxu0 %v1795
        %2060 = vmatprep.subr.bf16.mxu0 %v1793
        %2061 = vmatpush1.bf16.msra.mxu0 %v1792
        %2062 = vmatprep.subr.bf16.mxu0 %v1790
        %2063 = vmatpush1.bf16.msra.mxu0 %v1789
        %2064 = vmatprep.subr.bf16.mxu0 %v1787
        %2065 = vmatpush1.bf16.msra.mxu0 %v1786
        %2066 = vmatprep.subr.bf16.mxu0 0
        %2067 = vmatpush2.bf16.msra.mxu0 0
        %2068 = vmatprep.subr.bf16.mxu0 0
        %2069 = vmatpush2.bf16.msra.mxu0 0
        %2070 = vmatprep.subr.bf16.mxu0 0
        %2071 = vmatpush2.bf16.msra.mxu0 0
        %2072 = vmatprep.subr.bf16.mxu0 0
        %2073 = vmatpush2.bf16.msra.mxu0 0
        %2074 = vmatprep.subr.bf16.mxu0 0
        %2075 = vmatpush2.bf16.msra.mxu0 0
        %2076 = vmatprep.subr.bf16.mxu0 0
        %2077 = vmatpush2.bf16.msra.mxu0 0
        %2078 = vmatprep.subr.bf16.mxu0 0
        %2079 = vmatpush2.bf16.msra.mxu0 0
        %2080 = vmatprep.subr.bf16.mxu0 0
        %2081 = vmatpush2.bf16.msra.mxu0 0
        %2082 = vmatprep.mubr.bf16.mxu0 0
        %2083 = vmatmul.mubr.bf16.gmra.mxu0 %v2049
        %v2084 = vpop.f32.mrf.mxu0
        %v2085 = vadd.f32 0.0, %v2084
        %v2086 = vpop.f32.mrf.mxu0
        %v2087 = vadd.f32 0.0, %v2086
        %v2088 = vpop.f32.mrf.mxu0
        %v2089 = vpop.f32.mrf.mxu0
        %2090 = vdwg.mxu0
        %2091 = vmatprep.subr.bf16.mxu0 0
        %2092 = vmatpush1.bf16.msra.mxu0 %v1809
        %2093 = vmatprep.subr.bf16.mxu0 0
        %2094 = vmatpush1.bf16.msra.mxu0 %v1806
        %2095 = vmatprep.subr.bf16.mxu0 0
        %2096 = vmatpush1.bf16.msra.mxu0 %v1803
        %2097 = vmatprep.subr.bf16.mxu0 0
        %2098 = vmatpush1.bf16.msra.mxu0 %v1800
        %2099 = vmatprep.subr.bf16.mxu0 0
        %2100 = vmatpush1.bf16.msra.mxu0 %v1797
        %2101 = vmatprep.subr.bf16.mxu0 0
        %2102 = vmatpush1.bf16.msra.mxu0 %v1794
        %2103 = vmatprep.subr.bf16.mxu0 0
        %2104 = vmatpush1.bf16.msra.mxu0 %v1791
        %2105 = vmatprep.subr.bf16.mxu0 0
        %2106 = vmatpush1.bf16.msra.mxu0 %v1788
        %2107 = vmatprep.subr.bf16.mxu0 0
        %2108 = vmatpush2.bf16.msra.mxu0 0
        %2109 = vmatprep.subr.bf16.mxu0 0
        %2110 = vmatpush2.bf16.msra.mxu0 0
        %2111 = vmatprep.subr.bf16.mxu0 0
        %2112 = vmatpush2.bf16.msra.mxu0 0
        %2113 = vmatprep.subr.bf16.mxu0 0
        %2114 = vmatpush2.bf16.msra.mxu0 0
        %2115 = vmatprep.subr.bf16.mxu0 0
        %2116 = vmatpush2.bf16.msra.mxu0 0
        %2117 = vmatprep.subr.bf16.mxu0 0
        %2118 = vmatpush2.bf16.msra.mxu0 0
        %2119 = vmatprep.subr.bf16.mxu0 0
        %2120 = vmatpush2.bf16.msra.mxu0 0
        %2121 = vmatprep.subr.bf16.mxu0 0
        %2122 = vmatpush2.bf16.msra.mxu0 0
        %2123 = vmatprep.mubr.bf16.mxu0 0
        %2124 = vmatmul.mubr.bf16.gmra.mxu0 %v2049
        %v2125 = vpop.f32.mrf.mxu0
        %v2126 = vadd.f32 0.0, %v2125
        %v2127 = vpop.f32.mrf.mxu0
        %v2128 = vpop.f32.mrf.mxu0
        %v2129 = vpop.f32.mrf.mxu0
        %2130 = vdwg.mxu0
        %v2131 = vadd.f32 %v2046, %v2085
        %v2132 = vxor.u32 %v2131, 2147483648
        %v2133 = vmul.f32 %v2132, 1.442695
        %v2134 = vpow.pop %v2133
        %v2135 = vadd.f32 %v2134, 1.0
        %v2136 = vrcp.pop %v2135
        %v2137 = vmul.f32 1.0, %v2136
        %v2138 = vadd.f32 %v2047, %v2087
        %v2139 = vxor.u32 %v2138, 2147483648
        %v2140 = vmul.f32 %v2139, 1.442695
        %v2141 = vpow.pop %v2140
        %v2142 = vadd.f32 %v2141, 1.0
        %v2143 = vrcp.pop %v2142
        %v2144 = vmul.f32 1.0, %v2143
        %v2145 = vadd.f32 %v2126, %v1698
        %v2146 = vmul.f32 %v2137, %v2145
        %v2147 = vadd.f32 %v2048, %v2146
        %v2148 = vtanh.pop %v2147
        %v2149 = vsub.f32 1.0, %v2144
        %v2150 = vmul.f32 %v2149, %v2148
        %v2151 = vmul.f32 %v2144, %v2044
        %v2152 = vadd.f32 %v2150, %v2151
        %2153 = vst [vmem:[%s1249] sm:$0xff] %v2152
        %v2154 = vld [vmem:[%s1253] sm:$0xff]
        %v2155 = vld [vmem:[%s1253 + $0x8] sm:$0xff]
        %v2156 = vld [vmem:[%s1253 + $0x10] sm:$0xff]
        %v2157 = vpack.c.bf16 %v2152, %v2152
        %2158 = vmatprep.subr.bf16.mxu0 %v1808
        %2159 = vmatpush1.bf16.msra.mxu0 %v1807
        %2160 = vmatprep.subr.bf16.mxu0 %v1805
        %2161 = vmatpush1.bf16.msra.mxu0 %v1804
        %2162 = vmatprep.subr.bf16.mxu0 %v1802
        %2163 = vmatpush1.bf16.msra.mxu0 %v1801
        %2164 = vmatprep.subr.bf16.mxu0 %v1799
        %2165 = vmatpush1.bf16.msra.mxu0 %v1798
        %2166 = vmatprep.subr.bf16.mxu0 %v1796
        %2167 = vmatpush1.bf16.msra.mxu0 %v1795
        %2168 = vmatprep.subr.bf16.mxu0 %v1793
        %2169 = vmatpush1.bf16.msra.mxu0 %v1792
        %2170 = vmatprep.subr.bf16.mxu0 %v1790
        %2171 = vmatpush1.bf16.msra.mxu0 %v1789
        %2172 = vmatprep.subr.bf16.mxu0 %v1787
        %2173 = vmatpush1.bf16.msra.mxu0 %v1786
        %2174 = vmatprep.subr.bf16.mxu0 0
        %2175 = vmatpush2.bf16.msra.mxu0 0
        %2176 = vmatprep.subr.bf16.mxu0 0
        %2177 = vmatpush2.bf16.msra.mxu0 0
        %2178 = vmatprep.subr.bf16.mxu0 0
        %2179 = vmatpush2.bf16.msra.mxu0 0
        %2180 = vmatprep.subr.bf16.mxu0 0
        %2181 = vmatpush2.bf16.msra.mxu0 0
        %2182 = vmatprep.subr.bf16.mxu0 0
        %2183 = vmatpush2.bf16.msra.mxu0 0
        %2184 = vmatprep.subr.bf16.mxu0 0
        %2185 = vmatpush2.bf16.msra.mxu0 0
        %2186 = vmatprep.subr.bf16.mxu0 0
        %2187 = vmatpush2.bf16.msra.mxu0 0
        %2188 = vmatprep.subr.bf16.mxu0 0
        %2189 = vmatpush2.bf16.msra.mxu0 0
        %2190 = vmatprep.mubr.bf16.mxu0 0
        %2191 = vmatmul.mubr.bf16.gmra.mxu0 %v2157
        %v2192 = vpop.f32.mrf.mxu0
        %v2193 = vadd.f32 0.0, %v2192
        %v2194 = vpop.f32.mrf.mxu0
        %v2195 = vadd.f32 0.0, %v2194
        %v2196 = vpop.f32.mrf.mxu0
        %v2197 = vpop.f32.mrf.mxu0
        %2198 = vdwg.mxu0
        %2199 = vmatprep.subr.bf16.mxu0 0
        %2200 = vmatpush1.bf16.msra.mxu0 %v1809
        %2201 = vmatprep.subr.bf16.mxu0 0
        %2202 = vmatpush1.bf16.msra.mxu0 %v1806
        %2203 = vmatprep.subr.bf16.mxu0 0
        %2204 = vmatpush1.bf16.msra.mxu0 %v1803
        %2205 = vmatprep.subr.bf16.mxu0 0
        %2206 = vmatpush1.bf16.msra.mxu0 %v1800
        %2207 = vmatprep.subr.bf16.mxu0 0
        %2208 = vmatpush1.bf16.msra.mxu0 %v1797
        %2209 = vmatprep.subr.bf16.mxu0 0
        %2210 = vmatpush1.bf16.msra.mxu0 %v1794
        %2211 = vmatprep.subr.bf16.mxu0 0
        %2212 = vmatpush1.bf16.msra.mxu0 %v1791
        %2213 = vmatprep.subr.bf16.mxu0 0
        %2214 = vmatpush1.bf16.msra.mxu0 %v1788
        %2215 = vmatprep.subr.bf16.mxu0 0
        %2216 = vmatpush2.bf16.msra.mxu0 0
        %2217 = vmatprep.subr.bf16.mxu0 0
        %2218 = vmatpush2.bf16.msra.mxu0 0
        %2219 = vmatprep.subr.bf16.mxu0 0
        %2220 = vmatpush2.bf16.msra.mxu0 0
        %2221 = vmatprep.subr.bf16.mxu0 0
        %2222 = vmatpush2.bf16.msra.mxu0 0
        %2223 = vmatprep.subr.bf16.mxu0 0
        %2224 = vmatpush2.bf16.msra.mxu0 0
        %2225 = vmatprep.subr.bf16.mxu0 0
        %2226 = vmatpush2.bf16.msra.mxu0 0
        %2227 = vmatprep.subr.bf16.mxu0 0
        %2228 = vmatpush2.bf16.msra.mxu0 0
        %2229 = vmatprep.subr.bf16.mxu0 0
        %2230 = vmatpush2.bf16.msra.mxu0 0
        %2231 = vmatprep.mubr.bf16.mxu0 0
        %2232 = vmatmul.mubr.bf16.gmra.mxu0 %v2157
        %v2233 = vpop.f32.mrf.mxu0
        %v2234 = vadd.f32 0.0, %v2233
        %v2235 = vpop.f32.mrf.mxu0
        %v2236 = vpop.f32.mrf.mxu0
        %v2237 = vpop.f32.mrf.mxu0
        %2238 = vdwg.mxu0
        %v2239 = vadd.f32 %v2154, %v2193
        %v2240 = vxor.u32 %v2239, 2147483648
        %v2241 = vmul.f32 %v2240, 1.442695
        %v2242 = vpow.pop %v2241
        %v2243 = vadd.f32 %v2242, 1.0
        %v2244 = vrcp.pop %v2243
        %v2245 = vmul.f32 1.0, %v2244
        %v2246 = vadd.f32 %v2155, %v2195
        %v2247 = vxor.u32 %v2246, 2147483648
        %v2248 = vmul.f32 %v2247, 1.442695
        %v2249 = vpow.pop %v2248
        %v2250 = vadd.f32 %v2249, 1.0
        %v2251 = vrcp.pop %v2250
        %v2252 = vmul.f32 1.0, %v2251
        %v2253 = vadd.f32 %v2234, %v1698
        %v2254 = vmul.f32 %v2245, %v2253
        %v2255 = vadd.f32 %v2156, %v2254
        %v2256 = vtanh.pop %v2255
        %v2257 = vsub.f32 1.0, %v2252
        %v2258 = vmul.f32 %v2257, %v2256
        %v2259 = vmul.f32 %v2252, %v2152
        %v2260 = vadd.f32 %v2258, %v2259
        %2261 = vst [vmem:[%s1361] sm:$0xff] %v2260
        %2262 = vst [vmem:[%s1700] sm:$0xff] %v2260
        %v2263 = vld [vmem:[#allocation3] sm:$0xff]
        %v2264 = vld [vmem:[#allocation3 + $0x8] sm:$0xff]
        %v2265 = vld [vmem:[#allocation3 + $0x10] sm:$0xff]
        %v2266 = vld [vmem:[#allocation3 + $0x18] sm:$0xff]
        %v2267 = vpack.c.bf16 %v2264, %v2263
        %v2268 = vpack.c.bf16 %v2266, %v2265
        %v2269 = vld [vmem:[#allocation9] sm:$0xf]
        %v2270 = vld [vmem:[#allocation9 + $0x4] sm:$0xf]
        %v2271 = vld [vmem:[#allocation9 + $0x8] sm:$0xf]
        %v2272 = vld [vmem:[#allocation9 + $0xc] sm:$0xf]
        %v2273 = vld [vmem:[#allocation9 + $0x10] sm:$0xf]
        %v2274 = vld [vmem:[#allocation9 + $0x14] sm:$0xf]
        %v2275 = vld [vmem:[#allocation9 + $0x18] sm:$0xf]
        %v2276 = vld [vmem:[#allocation9 + $0x1c] sm:$0xf]
        %v2277 = vld [vmem:[#allocation9 + $0x20] sm:$0xf]
        %v2278 = vld [vmem:[#allocation9 + $0x24] sm:$0xf]
        %v2279 = vld [vmem:[#allocation9 + $0x28] sm:$0xf]
        %v2280 = vld [vmem:[#allocation9 + $0x2c] sm:$0xf]
        %v2281 = vld [vmem:[#allocation9 + $0x30] sm:$0xf]
        %v2282 = vld [vmem:[#allocation9 + $0x34] sm:$0xf]
        %v2283 = vld [vmem:[#allocation9 + $0x38] sm:$0xf]
        %v2284 = vld [vmem:[#allocation9 + $0x3c] sm:$0xf]
        %v2285 = vld [vmem:[%s10] sm:$0x1]
        %v2287 = vlaneseq
        %v2288 = vshrl.u32 %v2287, 7
        %v2289 = vsub.s32 0, %v2288
        %v2290 = vrot.slane %v2285, %v2289
        %v2308 = vunpack.c.l.b16 %v2269
        %v2309 = vunpack.c.l.b16 %v2270
        %v2310 = vunpack.c.l.b16 %v2271
        %v2311 = vunpack.c.l.b16 %v2272
        %v2312 = vunpack.c.l.b16 %v2273
        %v2313 = vunpack.c.l.b16 %v2274
        %v2314 = vunpack.c.l.b16 %v2275
        %v2315 = vunpack.c.l.b16 %v2276
        %v2316 = vunpack.c.l.b16 %v2277
        %v2317 = vunpack.c.l.b16 %v2278
        %v2318 = vunpack.c.l.b16 %v2279
        %v2319 = vunpack.c.l.b16 %v2280
        %v2320 = vunpack.c.l.b16 %v2281
        %v2321 = vunpack.c.l.b16 %v2282
        %v2322 = vunpack.c.l.b16 %v2283
        %v2323 = vunpack.c.l.b16 %v2284
        %v2324 = vpack.c.b16 %v2309, %v2308
        %v2325 = vpack.c.b16 %v2311, %v2310
        %v2326 = vpack.c.b16 %v2313, %v2312
        %v2327 = vpack.c.b16 %v2315, %v2314
        %v2328 = vpack.c.b16 %v2317, %v2316
        %v2329 = vpack.c.b16 %v2319, %v2318
        %v2330 = vpack.c.b16 %v2321, %v2320
        %v2331 = vpack.c.b16 %v2323, %v2322
        %2340 = vmatprep.subr.bf16.mxu0 0
        %2341 = vmatpush1.bf16.msra.mxu0 %v2331
        %2342 = vmatprep.subr.bf16.mxu0 0
        %2343 = vmatpush1.bf16.msra.mxu0 %v2330
        %2344 = vmatprep.subr.bf16.mxu0 0
        %2345 = vmatpush1.bf16.msra.mxu0 %v2329
        %2346 = vmatprep.subr.bf16.mxu0 0
        %2347 = vmatpush1.bf16.msra.mxu0 %v2328
        %2348 = vmatprep.subr.bf16.mxu0 0
        %2349 = vmatpush1.bf16.msra.mxu0 %v2327
        %2350 = vmatprep.subr.bf16.mxu0 0
        %2351 = vmatpush1.bf16.msra.mxu0 %v2326
        %2352 = vmatprep.subr.bf16.mxu0 0
        %2353 = vmatpush1.bf16.msra.mxu0 %v2325
        %2354 = vmatprep.subr.bf16.mxu0 0
        %2355 = vmatpush1.bf16.msra.mxu0 %v2324
        %2356 = vmatprep.subr.bf16.mxu0 0
        %2357 = vmatpush2.bf16.msra.mxu0 0
        %2358 = vmatprep.subr.bf16.mxu0 0
        %2359 = vmatpush2.bf16.msra.mxu0 0
        %2360 = vmatprep.subr.bf16.mxu0 0
        %2361 = vmatpush2.bf16.msra.mxu0 0
        %2362 = vmatprep.subr.bf16.mxu0 0
        %2363 = vmatpush2.bf16.msra.mxu0 0
        %2364 = vmatprep.subr.bf16.mxu0 0
        %2365 = vmatpush2.bf16.msra.mxu0 0
        %2366 = vmatprep.subr.bf16.mxu0 0
        %2367 = vmatpush2.bf16.msra.mxu0 0
        %2368 = vmatprep.subr.bf16.mxu0 0
        %2369 = vmatpush2.bf16.msra.mxu0 0
        %2370 = vmatprep.subr.bf16.mxu0 0
        %2371 = vmatpush2.bf16.msra.mxu0 0
        %2372 = vmatprep.mubr.bf16.mxu0 0
        %2373 = vmatmul.mubr.bf16.gmra.mxu0 %v2267
        %v2374 = vpop.f32.mrf.mxu0
        %v2375 = vadd.f32 %v2290, %v2374
        %v2376 = vpop.f32.mrf.mxu0
        %v2377 = vpop.f32.mrf.mxu0
        %v2378 = vadd.f32 %v2290, %v2377
        %v2379 = vpop.f32.mrf.mxu0
        %2380 = vmatprep.mubr.bf16.mxu0 0
        %2381 = vmatmul.mubr.bf16.gmra.mxu0 %v2268
        %v2382 = vpop.f32.mrf.mxu0
        %v2383 = vadd.f32 %v2290, %v2382
        %v2384 = vpop.f32.mrf.mxu0
        %v2385 = vpop.f32.mrf.mxu0
        %v2386 = vadd.f32 %v2290, %v2385
        %v2387 = vpop.f32.mrf.mxu0
        %2388 = vdwg.mxu0
        %2389 = vst [vmem:[%s432] sm:$0xff] %v2375
        %2390 = vst [vmem:[%s432 + $0x8] sm:$0xff] %v2378
        %2391 = vst [vmem:[%s432 + $0x10] sm:$0xff] %v2383
        %2392 = vst [vmem:[%s432 + $0x18] sm:$0xff] %v2386
        %s2393 = smul.u32 4, %s24
        %p2394 = scmp.lt.s32.totalorder %s2393, 7
        %s2395 = scalar_select %p2394, %s2393, 7
        %s2396 = smul.addr %s2395, 8
        %s2397 = scalar_lea.vmem %s11, %s2396
        // Predicated region
        $region81: #{_lambda_.1} parent=63 // pred_check
          %p2398 = pneg %p278
        $region82: #{_lambda_.1} parent=63 // pred_check_branch
          %2400 = sbr.rel (%p2398) target = $region84
        $region83: #{_lambda_.1} parent=63 // pred_region
          %s2401 = smul.u32 4, %s24
        $region84: #{_lambda_.1} parent=63 // pred_fallthru
          _
      $region64: #{_lambda_.1} parent=5 // pred_fallthru
        _
      %p2402 = scmp.le.s32.totalorder 2, %s19
      // Predicated region
      $region85: #{_lambda_.1} parent=5 // pred_check
        %p2403 = pneg %p2402
      $region86: #{_lambda_.1} parent=5 // pred_check_branch
        %2405 = sbr.rel (%p2403) target = $region88
      $region87: #{_lambda_.1} parent=5 // pred_region
        %s2406 = ssub.s32 %s19, 2
        // Predicated region
        $region89: #{_lambda_.1} parent=87 // pred_check
          %p2407 = pneg %p284
        $region90: #{_lambda_.1} parent=87 // pred_check_branch
          %2409 = sbr.rel (%p2407) target = $region92
        $region91: #{_lambda_.1} parent=87 // pred_region
          %s2410 = smul.u32 4, %s25
          %p2411 = scmp.lt.s32.totalorder %s2410, 7
          %s2412 = scalar_select %p2411, %s2410, 7
          %s2413 = smul.addr %s2412, 8
          %s2414 = scalar_lea.vmem %s11, %s2413
        $region92: #{_lambda_.1} parent=87 // pred_fallthru
          _
      $region88: #{_lambda_.1} parent=5 // pred_fallthru
        _
    $region6: #{_lambda_.1} parent=1 // loop_footer
      %s23 = sadd.s32 1, %s19
    $region7: #{_lambda_.1} parent=1 // loop_footer_branch
      %18 = sbr.rel target = $region3
    $region8: #{_lambda_.1} parent=1 // loop_exit
      _
    %2415 = vsyncpa [#allocation6], 1
    %s2416 = scalar_lea.sflag [#allocation6], 1
    %2417 = vsyncpa %s2416, 1
    %2418 = vsyncpa [#allocation8], 1

</llo_original>
